<compile_context>
chip_gen: v5e
topology: v5e:2x2
jax: 0.10.0
libtpu: 0.0.40
codegen_flags: <defaults>
</compile_context>

<pallas_src>
import jax
import jax.numpy as jnp
from jax import lax
from jax.experimental import pallas as pl
from jax.experimental.pallas import tpu as pltpu


# ----------------------------- Pallas kernel --------------------------------
def encoder_lstm_kernel(src_ref, emb_ref, wih0_ref, wih_ref, whh_ref, b_ref,
                        h_out_ref, c_out_ref, y_scr):
    """Fused embedding + multi-layer LSTM over the full sequence.

    src_ref  : (S*B, 1)    int32 token ids (flattened, seq-major)
    emb_ref  : (V, E)      bf16 embedding table
    wih0_ref : (E, 4H)     bf16 layer-0 input-to-hidden weights (pre-transposed)
    wih_ref  : (max(L-1,1), H, 4H) bf16 layers>=1 input-to-hidden weights
    whh_ref  : (L, H, 4H)  bf16 hidden-to-hidden weights (pre-transposed)
    b_ref    : (L, 1, 4H)  f32 combined bias (b_ih + b_hh), gate order i|f|g|o
    h_out_ref, c_out_ref : (L, B, H) f32 final hidden / cell state per layer
    y_scr    : (S*B, H)    bf16 VMEM scratch for inter-layer activations
    """
    L, B, H = h_out_ref.shape
    SB = src_ref.shape[0]
    S = SB // B
    V = emb_ref.shape[0]

    # ---- fused embedding gather: one_hot(src) @ table  (single MXU op) -----
    onehot = (src_ref[...] ==
              lax.broadcasted_iota(jnp.int32, (SB, V), 1)).astype(jnp.bfloat16)
    x_all = jnp.dot(onehot, emb_ref[...],
                    preferred_element_type=jnp.float32).astype(jnp.bfloat16)
    # TODO(synk): dropout is identity (eval mode / p=0.0); training-mode
    # stochastic masks between embedding and LSTM layers are not reproduced.

    for l in range(L):
        w_x = wih0_ref[...] if l == 0 else wih_ref[l - 1]     # (in_dim, 4H) bf16
        w_h = whh_ref[l]                                      # (H, 4H) bf16
        bias = b_ref[l]                                       # (1, 4H) f32

        # ---- phase 1: ALL input-to-hidden gates in one batched matmul ------
        # (S*B, in) @ (in, 4H); no cross-step dependency -> off the recurrent
        # critical path, single MXU issue/drain per layer.
        gx_all = jnp.dot(x_all, w_x, preferred_element_type=jnp.float32) + bias

        # ---- phase 2: serial recurrence; h/c carried in registers ----------
        h_t = jnp.zeros((B, H), jnp.float32)                  # nn.LSTM zero init
        c_t = jnp.zeros((B, H), jnp.float32)
        write_y = (l + 1 < L)                                 # last layer: no y
        for t in range(S):
            gates = gx_all[t * B:(t + 1) * B, :] + jnp.dot(
                h_t.astype(jnp.bfloat16), w_h,
                preferred_element_type=jnp.float32)           # (B, 4H) f32
            # Two full-(B,4H) EUP transcendentals, then static lane slices.
            sig = jax.nn.sigmoid(gates)
            th = jnp.tanh(gates)
            i_g = sig[:, 0 * H:1 * H]
            f_g = sig[:, 1 * H:2 * H]
            g_g = th[:, 2 * H:3 * H]
            o_g = sig[:, 3 * H:4 * H]
            c_t = f_g * c_t + i_g * g_g
            h_t = o_g * jnp.tanh(c_t)
            if write_y:
                # Off-critical-path store (vst slot is idle in this loop).
                y_scr[pl.ds(t * B, B), :] = h_t.astype(jnp.bfloat16)

        h_out_ref[l] = h_t
        c_out_ref[l] = c_t
        if write_y:
            x_all = y_scr[...]            # (S*B, H) bf16: next layer's input


def encoder_rnn(src_flat, emb_bf16, wih0_t, wih_t, whh_t, bias, *, batch):
    """src_flat: (S*B, 1) int32 -> (hidden, cell), each (L, batch, H) f32."""
    L, H = whh_t.shape[0], whh_t.shape[1]
    SB = src_flat.shape[0]
    vmem = pl.BlockSpec(memory_space=pltpu.MemorySpace.VMEM)
    return pl.pallas_call(
        encoder_lstm_kernel,
        out_shape=(
            jax.ShapeDtypeStruct((L, batch, H), jnp.float32),   # hidden
            jax.ShapeDtypeStruct((L, batch, H), jnp.float32),   # cell
        ),
        in_specs=[vmem] * 6,
        out_specs=(vmem, vmem),
        scratch_shapes=[pltpu.VMEM((SB, H), jnp.bfloat16)],
    )(src_flat, emb_bf16, wih0_t, wih_t, whh_t, bias)


# ------------------------------ parameter setup ------------------------------
def init_encoder_params(key, input_dim, emb_dim, hidden_dim, n_layers):
    """Deterministic synthetic parameters (PyTorch-style uniform init)."""
    keys = jax.random.split(key, 1 + 4 * n_layers)
    emb_w = jax.random.normal(keys[0], (input_dim, emb_dim), jnp.float32)
    k = 1.0 / jnp.sqrt(hidden_dim)
    layers = []
    for l in range(n_layers):
        in_dim = emb_dim if l == 0 else hidden_dim
        k0, k1, k2, k3 = keys[1 + 4 * l: 1 + 4 * (l + 1)]
        w_ih = jax.random.uniform(k0, (4 * hidden_dim, in_dim), jnp.float32, -k, k)
        w_hh = jax.random.uniform(k1, (4 * hidden_dim, hidden_dim), jnp.float32, -k, k)
        b_ih = jax.random.uniform(k2, (4 * hidden_dim,), jnp.float32, -k, k)
        b_hh = jax.random.uniform(k3, (4 * hidden_dim,), jnp.float32, -k, k)
        layers.append((w_ih, w_hh, (b_ih + b_hh).reshape(1, 4 * hidden_dim)))
    return emb_w, layers


def pack_encoder_params(emb_w, layers):
    """Pre-transpose / stack / bf16-cast parameters ONCE (outside the kernel)."""
    H = layers[0][1].shape[1]
    emb_bf16 = emb_w.astype(jnp.bfloat16)                         # (V, E)
    wih0_t = layers[0][0].T.astype(jnp.bfloat16)                  # (E, 4H)
    if len(layers) > 1:
        wih_t = jnp.stack([w_ih.T for (w_ih, _, _) in layers[1:]]
                          ).astype(jnp.bfloat16)                  # (L-1, H, 4H)
    else:
        wih_t = jnp.zeros((1, H, 4 * H), jnp.bfloat16)            # unused (L==1)
    whh_t = jnp.stack([w_hh.T for (_, w_hh, _) in layers]
                      ).astype(jnp.bfloat16)                      # (L, H, 4H)
    bias = jnp.stack([b for (_, _, b) in layers])                 # (L, 1, 4H) f32
    return emb_bf16, wih0_t, wih_t, whh_t, bias


# ------------------------------ Encoder forward -------------------------------
def encoder_forward(src, packed):
    """src: (S, B) int32 -> (hidden, cell), each (n_layers, B, H)."""
    emb_bf16, wih0_t, wih_t, whh_t, bias = packed
    S, B = src.shape
    src_flat = src.reshape(S * B, 1).astype(jnp.int32)   # free metadata reshape
    return encoder_rnn(src_flat, emb_bf16, wih0_t, wih_t, whh_t, bias, batch=B)


# ------------------------------ pure-JAX reference ---------------------------
def encoder_ref(src, emb_w, layers, operand_dtype=jnp.float32):
    """Reference LSTM; operand_dtype controls matmul-operand precision."""
    cast = lambda a: a.astype(operand_dtype)
    x = cast(emb_w)[src]                                  # (S, B, E)
    h_list, c_list = [], []
    for (w_ih, w_hh, b) in layers:
        B = x.shape[1]
        H = w_hh.shape[1]
        w_ih_c, w_hh_c = cast(w_ih), cast(w_hh)

        def step(carry, x_t):
            h, c = carry
            gates = (jnp.dot(x_t, w_ih_c.T, preferred_element_type=jnp.float32)
                     + jnp.dot(cast(h), w_hh_c.T, preferred_element_type=jnp.float32)
                     + b[0])
            i, f, g, o = jnp.split(gates, 4, axis=-1)
            c = jax.nn.sigmoid(f) * c + jax.nn.sigmoid(i) * jnp.tanh(g)
            h = jax.nn.sigmoid(o) * jnp.tanh(c)
            return (h, c), cast(h)

        init = (jnp.zeros((B, H), jnp.float32), jnp.zeros((B, H), jnp.float32))
        (h, c), ys = lax.scan(step, init, x)
        h_list.append(h)
        c_list.append(c)
        x = ys
    return jnp.stack(h_list, axis=0), jnp.stack(c_list, axis=0)


# ----------------------------------- main ------------------------------------
if __name__ == "__main__":
    # Encoder(input_dim=50, emb_dim=32, hidden_dim=32, n_layers=2, dropout=0.0)
    INPUT_DIM, EMB_DIM, HIDDEN_DIM, N_LAYERS = 50, 32, 32, 2
    SEQ_LEN, BATCH = 8, 4

    key = jax.random.PRNGKey(0)
    k_src, k_params = jax.random.split(key)
    src = jax.random.randint(k_src, (SEQ_LEN, BATCH), 0, INPUT_DIM, jnp.int32)

    emb_w, layers = init_encoder_params(k_params, INPUT_DIM, EMB_DIM,
                                        HIDDEN_DIM, N_LAYERS)
    packed = pack_encoder_params(emb_w, layers)   # transpose/stack/cast once

    hidden, cell = encoder_forward(src, packed)
    hidden, cell = jax.block_until_ready((hidden, cell))

    assert hidden.shape == (N_LAYERS, BATCH, HIDDEN_DIM)
    assert cell.shape == (N_LAYERS, BATCH, HIDDEN_DIM)

    # Tight check against a reference with matching bf16 MXU operands
    # (f32 accumulation) -- validates the fused structure.
    h_bf, c_bf = encoder_ref(src, emb_w, layers, operand_dtype=jnp.bfloat16)
    assert jnp.allclose(hidden, h_bf, atol=5e-3, rtol=5e-3)
    assert jnp.allclose(cell, c_bf, atol=5e-3, rtol=5e-3)

    # Looser check against the full-f32 golden reference; the slack is the
    # expected bf16-operand quantization through S*L = 16 recurrent steps.
    h_ref, c_ref = encoder_ref(src, emb_w, layers, operand_dtype=jnp.float32)
    assert jnp.allclose(hidden, h_ref, atol=5e-2, rtol=5e-2)
    assert jnp.allclose(cell, c_ref, atol=5e-2, rtol=5e-2)

    print("KERNEL_OK")
</pallas_src>

<mosaic_0001>
module attributes {stable_mosaic.version = 11 : i64} {
  func.func @encoder_lstm_kernel(%arg0: memref<32x1xi32, #tpu.memory_space<vmem>>, %arg1: memref<50x32xbf16, #tpu.memory_space<vmem>>, %arg2: memref<32x128xbf16, #tpu.memory_space<vmem>>, %arg3: memref<1x32x128xbf16, #tpu.memory_space<vmem>>, %arg4: memref<2x32x128xbf16, #tpu.memory_space<vmem>>, %arg5: memref<2x1x128xf32, #tpu.memory_space<vmem>>, %arg6: memref<2x4x32xf32, #tpu.memory_space<vmem>>, %arg7: memref<2x4x32xf32, #tpu.memory_space<vmem>>, %arg8: memref<32x32xbf16, #tpu.memory_space<vmem>>) attributes {dimension_semantics = [], scalar_prefetch = 0 : i64, scratch_operands = 1 : i64, tpu.core_type = #tpu.core_type<tc>} {
    %c0 = arith.constant 0 : index
    %c0_0 = arith.constant 0 : index
    %0 = vector.load %arg0[%c0, %c0_0] : memref<32x1xi32, #tpu.memory_space<vmem>>, vector<32x1xi32>
    %1 = tpu.iota {dimensions = array<i32: 1>} : vector<32x50xi32>
    %2 = vector.broadcast %0 : vector<32x1xi32> to vector<32x50xi32>
    %3 = arith.cmpi eq, %2, %1 : vector<32x50xi32>
    %4 = arith.extui %3 : vector<32x50xi1> to vector<32x50xi32>
    %5 = arith.sitofp %4 : vector<32x50xi32> to vector<32x50xf32>
    %6 = arith.truncf %5 : vector<32x50xf32> to vector<32x50xbf16>
    %c0_1 = arith.constant 0 : index
    %c0_2 = arith.constant 0 : index
    %7 = vector.load %arg1[%c0_1, %c0_2] : memref<50x32xbf16, #tpu.memory_space<vmem>>, vector<50x32xbf16>
    %cst = arith.constant dense<0.000000e+00> : vector<32x32xf32>
    %8 = tpu.matmul %6, %7, %cst {dimension_numbers = #tpu.dot_dimension_numbers<[1], [0], [0], [1], [0, 0, 1, 1], [], []>} : vector<32x50xbf16>, vector<50x32xbf16>, vector<32x32xf32> -> vector<32x32xf32>
    %9 = arith.truncf %8 : vector<32x32xf32> to vector<32x32xbf16>
    %c0_3 = arith.constant 0 : index
    %c0_4 = arith.constant 0 : index
    %10 = vector.load %arg2[%c0_3, %c0_4] : memref<32x128xbf16, #tpu.memory_space<vmem>>, vector<32x128xbf16>
    %c0_5 = arith.constant 0 : index
    %c0_6 = arith.constant 0 : index
    %c0_7 = arith.constant 0 : index
    %11 = vector.load %arg4[%c0_5, %c0_6, %c0_7] : memref<2x32x128xbf16, #tpu.memory_space<vmem>>, vector<1x32x128xbf16>
    %12 = vector.shape_cast %11 : vector<1x32x128xbf16> to vector<32x128xbf16>
    %c0_8 = arith.constant 0 : index
    %c0_9 = arith.constant 0 : index
    %c0_10 = arith.constant 0 : index
    %13 = vector.load %arg5[%c0_8, %c0_9, %c0_10] : memref<2x1x128xf32, #tpu.memory_space<vmem>>, vector<1x1x128xf32>
    %14 = vector.shape_cast %13 : vector<1x1x128xf32> to vector<1x128xf32>
    %cst_11 = arith.constant dense<0.000000e+00> : vector<32x128xf32>
    %15 = tpu.matmul %9, %10, %cst_11 {dimension_numbers = #tpu.dot_dimension_numbers<[1], [0], [0], [1], [0, 0, 1, 1], [], []>} : vector<32x32xbf16>, vector<32x128xbf16>, vector<32x128xf32> -> vector<32x128xf32>
    %16 = vector.broadcast %14 : vector<1x128xf32> to vector<32x128xf32>
    %17 = arith.addf %15, %16 : vector<32x128xf32>
    %cst_12 = arith.constant 0.000000e+00 : f32
    %18 = vector.broadcast %cst_12 : f32 to vector<4x32xf32>
    %cst_13 = arith.constant 0.000000e+00 : f32
    %19 = vector.broadcast %cst_13 : f32 to vector<4x32xf32>
    %20 = vector.extract_strided_slice %17 {offsets = [0, 0], sizes = [4, 128], strides = [1, 1]} : vector<32x128xf32> to vector<4x128xf32>
    %21 = arith.truncf %18 : vector<4x32xf32> to vector<4x32xbf16>
    %cst_14 = arith.constant dense<0.000000e+00> : vector<4x128xf32>
    %22 = tpu.matmul %21, %12, %cst_14 {dimension_numbers = #tpu.dot_dimension_numbers<[1], [0], [0], [1], [0, 0, 1, 1], [], []>} : vector<4x32xbf16>, vector<32x128xbf16>, vector<4x128xf32> -> vector<4x128xf32>
    %23 = arith.addf %20, %22 : vector<4x128xf32>
    %24 = arith.negf %23 : vector<4x128xf32>
    %25 = math.exp %24 : vector<4x128xf32>
    %cst_15 = arith.constant 1.000000e+00 : f32
    %26 = vector.broadcast %cst_15 : f32 to vector<4x128xf32>
    %27 = arith.addf %26, %25 : vector<4x128xf32>
    %28 = arith.divf %26, %27 : vector<4x128xf32>
    %29 = math.tanh %23 : vector<4x128xf32>
    %30 = vector.extract_strided_slice %28 {offsets = [0, 0], sizes = [4, 32], strides = [1, 1]} : vector<4x128xf32> to vector<4x32xf32>
    %31 = vector.extract_strided_slice %28 {offsets = [0, 32], sizes = [4, 32], strides = [1, 1]} : vector<4x128xf32> to vector<4x32xf32>
    %32 = vector.extract_strided_slice %29 {offsets = [0, 64], sizes = [4, 32], strides = [1, 1]} : vector<4x128xf32> to vector<4x32xf32>
    %33 = vector.extract_strided_slice %28 {offsets = [0, 96], sizes = [4, 32], strides = [1, 1]} : vector<4x128xf32> to vector<4x32xf32>
    %34 = arith.mulf %31, %19 : vector<4x32xf32>
    %35 = arith.mulf %30, %32 : vector<4x32xf32>
    %36 = arith.addf %34, %35 : vector<4x32xf32>
    %37 = math.tanh %36 : vector<4x32xf32>
    %38 = arith.mulf %33, %37 : vector<4x32xf32>
    %39 = arith.truncf %38 : vector<4x32xf32> to vector<4x32xbf16>
    %c0_16 = arith.constant 0 : index
    %c0_17 = arith.constant 0 : index
    %40 = vector.load %arg8[%c0_16, %c0_17] : memref<32x32xbf16, #tpu.memory_space<vmem>>, vector<4x32xbf16>
    tpu.vector_store %arg8[%c0_16, %c0_17], %39 {strides = array<i32>} : memref<32x32xbf16, #tpu.memory_space<vmem>>, vector<4x32xbf16>,
    %41 = vector.extract_strided_slice %17 {offsets = [4, 0], sizes = [4, 128], strides = [1, 1]} : vector<32x128xf32> to vector<4x128xf32>
    %42 = arith.truncf %38 : vector<4x32xf32> to vector<4x32xbf16>
    %cst_18 = arith.constant dense<0.000000e+00> : vector<4x128xf32>
    %43 = tpu.matmul %42, %12, %cst_18 {dimension_numbers = #tpu.dot_dimension_numbers<[1], [0], [0], [1], [0, 0, 1, 1], [], []>} : vector<4x32xbf16>, vector<32x128xbf16>, vector<4x128xf32> -> vector<4x128xf32>
    %44 = arith.addf %41, %43 : vector<4x128xf32>
    %45 = arith.negf %44 : vector<4x128xf32>
    %46 = math.exp %45 : vector<4x128xf32>
    %cst_19 = arith.constant 1.000000e+00 : f32
    %47 = vector.broadcast %cst_19 : f32 to vector<4x128xf32>
    %48 = arith.addf %47, %46 : vector<4x128xf32>
    %49 = arith.divf %47, %48 : vector<4x128xf32>
    %50 = math.tanh %44 : vector<4x128xf32>
    %51 = vector.extract_strided_slice %49 {offsets = [0, 0], sizes = [4, 32], strides = [1, 1]} : vector<4x128xf32> to vector<4x32xf32>
    %52 = vector.extract_strided_slice %49 {offsets = [0, 32], sizes = [4, 32], strides = [1, 1]} : vector<4x128xf32> to vector<4x32xf32>
    %53 = vector.extract_strided_slice %50 {offsets = [0, 64], sizes = [4, 32], strides = [1, 1]} : vector<4x128xf32> to vector<4x32xf32>
    %54 = vector.extract_strided_slice %49 {offsets = [0, 96], sizes = [4, 32], strides = [1, 1]} : vector<4x128xf32> to vector<4x32xf32>
    %55 = arith.mulf %52, %36 : vector<4x32xf32>
    %56 = arith.mulf %51, %53 : vector<4x32xf32>
    %57 = arith.addf %55, %56 : vector<4x32xf32>
    %58 = math.tanh %57 : vector<4x32xf32>
    %59 = arith.mulf %54, %58 : vector<4x32xf32>
    %60 = arith.truncf %59 : vector<4x32xf32> to vector<4x32xbf16>
    %c4 = arith.constant 4 : index
    %c0_20 = arith.constant 0 : index
    %61 = vector.load %arg8[%c4, %c0_20] : memref<32x32xbf16, #tpu.memory_space<vmem>>, vector<4x32xbf16>
    tpu.vector_store %arg8[%c4, %c0_20], %60 {strides = array<i32>} : memref<32x32xbf16, #tpu.memory_space<vmem>>, vector<4x32xbf16>,
    %62 = vector.extract_strided_slice %17 {offsets = [8, 0], sizes = [4, 128], strides = [1, 1]} : vector<32x128xf32> to vector<4x128xf32>
    %63 = arith.truncf %59 : vector<4x32xf32> to vector<4x32xbf16>
    %cst_21 = arith.constant dense<0.000000e+00> : vector<4x128xf32>
    %64 = tpu.matmul %63, %12, %cst_21 {dimension_numbers = #tpu.dot_dimension_numbers<[1], [0], [0], [1], [0, 0, 1, 1], [], []>} : vector<4x32xbf16>, vector<32x128xbf16>, vector<4x128xf32> -> vector<4x128xf32>
    %65 = arith.addf %62, %64 : vector<4x128xf32>
    %66 = arith.negf %65 : vector<4x128xf32>
    %67 = math.exp %66 : vector<4x128xf32>
    %cst_22 = arith.constant 1.000000e+00 : f32
    %68 = vector.broadcast %cst_22 : f32 to vector<4x128xf32>
    %69 = arith.addf %68, %67 : vector<4x128xf32>
    %70 = arith.divf %68, %69 : vector<4x128xf32>
    %71 = math.tanh %65 : vector<4x128xf32>
    %72 = vector.extract_strided_slice %70 {offsets = [0, 0], sizes = [4, 32], strides = [1, 1]} : vector<4x128xf32> to vector<4x32xf32>
    %73 = vector.extract_strided_slice %70 {offsets = [0, 32], sizes = [4, 32], strides = [1, 1]} : vector<4x128xf32> to vector<4x32xf32>
    %74 = vector.extract_strided_slice %71 {offsets = [0, 64], sizes = [4, 32], strides = [1, 1]} : vector<4x128xf32> to vector<4x32xf32>
    %75 = vector.extract_strided_slice %70 {offsets = [0, 96], sizes = [4, 32], strides = [1, 1]} : vector<4x128xf32> to vector<4x32xf32>
    %76 = arith.mulf %73, %57 : vector<4x32xf32>
    %77 = arith.mulf %72, %74 : vector<4x32xf32>
    %78 = arith.addf %76, %77 : vector<4x32xf32>
    %79 = math.tanh %78 : vector<4x32xf32>
    %80 = arith.mulf %75, %79 : vector<4x32xf32>
    %81 = arith.truncf %80 : vector<4x32xf32> to vector<4x32xbf16>
    %c8 = arith.constant 8 : index
    %c0_23 = arith.constant 0 : index
    %82 = vector.load %arg8[%c8, %c0_23] : memref<32x32xbf16, #tpu.memory_space<vmem>>, vector<4x32xbf16>
    tpu.vector_store %arg8[%c8, %c0_23], %81 {strides = array<i32>} : memref<32x32xbf16, #tpu.memory_space<vmem>>, vector<4x32xbf16>,
    %83 = vector.extract_strided_slice %17 {offsets = [12, 0], sizes = [4, 128], strides = [1, 1]} : vector<32x128xf32> to vector<4x128xf32>
    %84 = arith.truncf %80 : vector<4x32xf32> to vector<4x32xbf16>
    %cst_24 = arith.constant dense<0.000000e+00> : vector<4x128xf32>
    %85 = tpu.matmul %84, %12, %cst_24 {dimension_numbers = #tpu.dot_dimension_numbers<[1], [0], [0], [1], [0, 0, 1, 1], [], []>} : vector<4x32xbf16>, vector<32x128xbf16>, vector<4x128xf32> -> vector<4x128xf32>
    %86 = arith.addf %83, %85 : vector<4x128xf32>
    %87 = arith.negf %86 : vector<4x128xf32>
    %88 = math.exp %87 : vector<4x128xf32>
    %cst_25 = arith.constant 1.000000e+00 : f32
    %89 = vector.broadcast %cst_25 : f32 to vector<4x128xf32>
    %90 = arith.addf %89, %88 : vector<4x128xf32>
    %91 = arith.divf %89, %90 : vector<4x128xf32>
    %92 = math.tanh %86 : vector<4x128xf32>
    %93 = vector.extract_strided_slice %91 {offsets = [0, 0], sizes = [4, 32], strides = [1, 1]} : vector<4x128xf32> to vector<4x32xf32>
    %94 = vector.extract_strided_slice %91 {offsets = [0, 32], sizes = [4, 32], strides = [1, 1]} : vector<4x128xf32> to vector<4x32xf32>
    %95 = vector.extract_strided_slice %92 {offsets = [0, 64], sizes = [4, 32], strides = [1, 1]} : vector<4x128xf32> to vector<4x32xf32>
    %96 = vector.extract_strided_slice %91 {offsets = [0, 96], sizes = [4, 32], strides = [1, 1]} : vector<4x128xf32> to vector<4x32xf32>
    %97 = arith.mulf %94, %78 : vector<4x32xf32>
    %98 = arith.mulf %93, %95 : vector<4x32xf32>
    %99 = arith.addf %97, %98 : vector<4x32xf32>
    %100 = math.tanh %99 : vector<4x32xf32>
    %101 = arith.mulf %96, %100 : vector<4x32xf32>
    %102 = arith.truncf %101 : vector<4x32xf32> to vector<4x32xbf16>
    %c12 = arith.constant 12 : index
    %c0_26 = arith.constant 0 : index
    %103 = vector.load %arg8[%c12, %c0_26] : memref<32x32xbf16, #tpu.memory_space<vmem>>, vector<4x32xbf16>
    tpu.vector_store %arg8[%c12, %c0_26], %102 {strides = array<i32>} : memref<32x32xbf16, #tpu.memory_space<vmem>>, vector<4x32xbf16>,
    %104 = vector.extract_strided_slice %17 {offsets = [16, 0], sizes = [4, 128], strides = [1, 1]} : vector<32x128xf32> to vector<4x128xf32>
    %105 = arith.truncf %101 : vector<4x32xf32> to vector<4x32xbf16>
    %cst_27 = arith.constant dense<0.000000e+00> : vector<4x128xf32>
    %106 = tpu.matmul %105, %12, %cst_27 {dimension_numbers = #tpu.dot_dimension_numbers<[1], [0], [0], [1], [0, 0, 1, 1], [], []>} : vector<4x32xbf16>, vector<32x128xbf16>, vector<4x128xf32> -> vector<4x128xf32>
    %107 = arith.addf %104, %106 : vector<4x128xf32>
    %108 = arith.negf %107 : vector<4x128xf32>
    %109 = math.exp %108 : vector<4x128xf32>
    %cst_28 = arith.constant 1.000000e+00 : f32
    %110 = vector.broadcast %cst_28 : f32 to vector<4x128xf32>
    %111 = arith.addf %110, %109 : vector<4x128xf32>
    %112 = arith.divf %110, %111 : vector<4x128xf32>
    %113 = math.tanh %107 : vector<4x128xf32>
    %114 = vector.extract_strided_slice %112 {offsets = [0, 0], sizes = [4, 32], strides = [1, 1]} : vector<4x128xf32> to vector<4x32xf32>
    %115 = vector.extract_strided_slice %112 {offsets = [0, 32], sizes = [4, 32], strides = [1, 1]} : vector<4x128xf32> to vector<4x32xf32>
    %116 = vector.extract_strided_slice %113 {offsets = [0, 64], sizes = [4, 32], strides = [1, 1]} : vector<4x128xf32> to vector<4x32xf32>
    %117 = vector.extract_strided_slice %112 {offsets = [0, 96], sizes = [4, 32], strides = [1, 1]} : vector<4x128xf32> to vector<4x32xf32>
    %118 = arith.mulf %115, %99 : vector<4x32xf32>
    %119 = arith.mulf %114, %116 : vector<4x32xf32>
    %120 = arith.addf %118, %119 : vector<4x32xf32>
    %121 = math.tanh %120 : vector<4x32xf32>
    %122 = arith.mulf %117, %121 : vector<4x32xf32>
    %123 = arith.truncf %122 : vector<4x32xf32> to vector<4x32xbf16>
    %c16 = arith.constant 16 : index
    %c0_29 = arith.constant 0 : index
    %124 = vector.load %arg8[%c16, %c0_29] : memref<32x32xbf16, #tpu.memory_space<vmem>>, vector<4x32xbf16>
    tpu.vector_store %arg8[%c16, %c0_29], %123 {strides = array<i32>} : memref<32x32xbf16, #tpu.memory_space<vmem>>, vector<4x32xbf16>,
    %125 = vector.extract_strided_slice %17 {offsets = [20, 0], sizes = [4, 128], strides = [1, 1]} : vector<32x128xf32> to vector<4x128xf32>
    %126 = arith.truncf %122 : vector<4x32xf32> to vector<4x32xbf16>
    %cst_30 = arith.constant dense<0.000000e+00> : vector<4x128xf32>
    %127 = tpu.matmul %126, %12, %cst_30 {dimension_numbers = #tpu.dot_dimension_numbers<[1], [0], [0], [1], [0, 0, 1, 1], [], []>} : vector<4x32xbf16>, vector<32x128xbf16>, vector<4x128xf32> -> vector<4x128xf32>
    %128 = arith.addf %125, %127 : vector<4x128xf32>
    %129 = arith.negf %128 : vector<4x128xf32>
    %130 = math.exp %129 : vector<4x128xf32>
    %cst_31 = arith.constant 1.000000e+00 : f32
    %131 = vector.broadcast %cst_31 : f32 to vector<4x128xf32>
    %132 = arith.addf %131, %130 : vector<4x128xf32>
    %133 = arith.divf %131, %132 : vector<4x128xf32>
    %134 = math.tanh %128 : vector<4x128xf32>
    %135 = vector.extract_strided_slice %133 {offsets = [0, 0], sizes = [4, 32], strides = [1, 1]} : vector<4x128xf32> to vector<4x32xf32>
    %136 = vector.extract_strided_slice %133 {offsets = [0, 32], sizes = [4, 32], strides = [1, 1]} : vector<4x128xf32> to vector<4x32xf32>
    %137 = vector.extract_strided_slice %134 {offsets = [0, 64], sizes = [4, 32], strides = [1, 1]} : vector<4x128xf32> to vector<4x32xf32>
    %138 = vector.extract_strided_slice %133 {offsets = [0, 96], sizes = [4, 32], strides = [1, 1]} : vector<4x128xf32> to vector<4x32xf32>
    %139 = arith.mulf %136, %120 : vector<4x32xf32>
    %140 = arith.mulf %135, %137 : vector<4x32xf32>
    %141 = arith.addf %139, %140 : vector<4x32xf32>
    %142 = math.tanh %141 : vector<4x32xf32>
    %143 = arith.mulf %138, %142 : vector<4x32xf32>
    %144 = arith.truncf %143 : vector<4x32xf32> to vector<4x32xbf16>
    %c20 = arith.constant 20 : index
    %c0_32 = arith.constant 0 : index
    %145 = vector.load %arg8[%c20, %c0_32] : memref<32x32xbf16, #tpu.memory_space<vmem>>, vector<4x32xbf16>
    tpu.vector_store %arg8[%c20, %c0_32], %144 {strides = array<i32>} : memref<32x32xbf16, #tpu.memory_space<vmem>>, vector<4x32xbf16>,
    %146 = vector.extract_strided_slice %17 {offsets = [24, 0], sizes = [4, 128], strides = [1, 1]} : vector<32x128xf32> to vector<4x128xf32>
    %147 = arith.truncf %143 : vector<4x32xf32> to vector<4x32xbf16>
    %cst_33 = arith.constant dense<0.000000e+00> : vector<4x128xf32>
    %148 = tpu.matmul %147, %12, %cst_33 {dimension_numbers = #tpu.dot_dimension_numbers<[1], [0], [0], [1], [0, 0, 1, 1], [], []>} : vector<4x32xbf16>, vector<32x128xbf16>, vector<4x128xf32> -> vector<4x128xf32>
    %149 = arith.addf %146, %148 : vector<4x128xf32>
    %150 = arith.negf %149 : vector<4x128xf32>
    %151 = math.exp %150 : vector<4x128xf32>
    %cst_34 = arith.constant 1.000000e+00 : f32
    %152 = vector.broadcast %cst_34 : f32 to vector<4x128xf32>
    %153 = arith.addf %152, %151 : vector<4x128xf32>
    %154 = arith.divf %152, %153 : vector<4x128xf32>
    %155 = math.tanh %149 : vector<4x128xf32>
    %156 = vector.extract_strided_slice %154 {offsets = [0, 0], sizes = [4, 32], strides = [1, 1]} : vector<4x128xf32> to vector<4x32xf32>
    %157 = vector.extract_strided_slice %154 {offsets = [0, 32], sizes = [4, 32], strides = [1, 1]} : vector<4x128xf32> to vector<4x32xf32>
    %158 = vector.extract_strided_slice %155 {offsets = [0, 64], sizes = [4, 32], strides = [1, 1]} : vector<4x128xf32> to vector<4x32xf32>
    %159 = vector.extract_strided_slice %154 {offsets = [0, 96], sizes = [4, 32], strides = [1, 1]} : vector<4x128xf32> to vector<4x32xf32>
    %160 = arith.mulf %157, %141 : vector<4x32xf32>
    %161 = arith.mulf %156, %158 : vector<4x32xf32>
    %162 = arith.addf %160, %161 : vector<4x32xf32>
    %163 = math.tanh %162 : vector<4x32xf32>
    %164 = arith.mulf %159, %163 : vector<4x32xf32>
    %165 = arith.truncf %164 : vector<4x32xf32> to vector<4x32xbf16>
    %c24 = arith.constant 24 : index
    %c0_35 = arith.constant 0 : index
    %166 = vector.load %arg8[%c24, %c0_35] : memref<32x32xbf16, #tpu.memory_space<vmem>>, vector<4x32xbf16>
    tpu.vector_store %arg8[%c24, %c0_35], %165 {strides = array<i32>} : memref<32x32xbf16, #tpu.memory_space<vmem>>, vector<4x32xbf16>,
    %167 = vector.extract_strided_slice %17 {offsets = [28, 0], sizes = [4, 128], strides = [1, 1]} : vector<32x128xf32> to vector<4x128xf32>
    %168 = arith.truncf %164 : vector<4x32xf32> to vector<4x32xbf16>
    %cst_36 = arith.constant dense<0.000000e+00> : vector<4x128xf32>
    %169 = tpu.matmul %168, %12, %cst_36 {dimension_numbers = #tpu.dot_dimension_numbers<[1], [0], [0], [1], [0, 0, 1, 1], [], []>} : vector<4x32xbf16>, vector<32x128xbf16>, vector<4x128xf32> -> vector<4x128xf32>
    %170 = arith.addf %167, %169 : vector<4x128xf32>
    %171 = arith.negf %170 : vector<4x128xf32>
    %172 = math.exp %171 : vector<4x128xf32>
    %cst_37 = arith.constant 1.000000e+00 : f32
    %173 = vector.broadcast %cst_37 : f32 to vector<4x128xf32>
    %174 = arith.addf %173, %172 : vector<4x128xf32>
    %175 = arith.divf %173, %174 : vector<4x128xf32>
    %176 = math.tanh %170 : vector<4x128xf32>
    %177 = vector.extract_strided_slice %175 {offsets = [0, 0], sizes = [4, 32], strides = [1, 1]} : vector<4x128xf32> to vector<4x32xf32>
    %178 = vector.extract_strided_slice %175 {offsets = [0, 32], sizes = [4, 32], strides = [1, 1]} : vector<4x128xf32> to vector<4x32xf32>
    %179 = vector.extract_strided_slice %176 {offsets = [0, 64], sizes = [4, 32], strides = [1, 1]} : vector<4x128xf32> to vector<4x32xf32>
    %180 = vector.extract_strided_slice %175 {offsets = [0, 96], sizes = [4, 32], strides = [1, 1]} : vector<4x128xf32> to vector<4x32xf32>
    %181 = arith.mulf %178, %162 : vector<4x32xf32>
    %182 = arith.mulf %177, %179 : vector<4x32xf32>
    %183 = arith.addf %181, %182 : vector<4x32xf32>
    %184 = math.tanh %183 : vector<4x32xf32>
    %185 = arith.mulf %180, %184 : vector<4x32xf32>
    %186 = arith.truncf %185 : vector<4x32xf32> to vector<4x32xbf16>
    %c28 = arith.constant 28 : index
    %c0_38 = arith.constant 0 : index
    %187 = vector.load %arg8[%c28, %c0_38] : memref<32x32xbf16, #tpu.memory_space<vmem>>, vector<4x32xbf16>
    tpu.vector_store %arg8[%c28, %c0_38], %186 {strides = array<i32>} : memref<32x32xbf16, #tpu.memory_space<vmem>>, vector<4x32xbf16>,
    %c0_39 = arith.constant 0 : index
    %c0_40 = arith.constant 0 : index
    %c0_41 = arith.constant 0 : index
    %188 = vector.load %arg6[%c0_39, %c0_40, %c0_41] : memref<2x4x32xf32, #tpu.memory_space<vmem>>, vector<1x4x32xf32>
    %189 = vector.shape_cast %188 : vector<1x4x32xf32> to vector<4x32xf32>
    %190 = vector.shape_cast %185 : vector<4x32xf32> to vector<1x4x32xf32>
    tpu.vector_store %arg6[%c0_39, %c0_40, %c0_41], %190 {strides = array<i32>} : memref<2x4x32xf32, #tpu.memory_space<vmem>>, vector<1x4x32xf32>,
    %c0_42 = arith.constant 0 : index
    %c0_43 = arith.constant 0 : index
    %c0_44 = arith.constant 0 : index
    %191 = vector.load %arg7[%c0_42, %c0_43, %c0_44] : memref<2x4x32xf32, #tpu.memory_space<vmem>>, vector<1x4x32xf32>
    %192 = vector.shape_cast %191 : vector<1x4x32xf32> to vector<4x32xf32>
    %193 = vector.shape_cast %183 : vector<4x32xf32> to vector<1x4x32xf32>
    tpu.vector_store %arg7[%c0_42, %c0_43, %c0_44], %193 {strides = array<i32>} : memref<2x4x32xf32, #tpu.memory_space<vmem>>, vector<1x4x32xf32>,
    %c0_45 = arith.constant 0 : index
    %c0_46 = arith.constant 0 : index
    %194 = vector.load %arg8[%c0_45, %c0_46] : memref<32x32xbf16, #tpu.memory_space<vmem>>, vector<32x32xbf16>
    %c0_47 = arith.constant 0 : index
    %c0_48 = arith.constant 0 : index
    %c0_49 = arith.constant 0 : index
    %195 = vector.load %arg3[%c0_47, %c0_48, %c0_49] : memref<1x32x128xbf16, #tpu.memory_space<vmem>>, vector<1x32x128xbf16>
    %196 = vector.shape_cast %195 : vector<1x32x128xbf16> to vector<32x128xbf16>
    %c1 = arith.constant 1 : index
    %c0_50 = arith.constant 0 : index
    %c0_51 = arith.constant 0 : index
    %197 = vector.load %arg4[%c1, %c0_50, %c0_51] : memref<2x32x128xbf16, #tpu.memory_space<vmem>>, vector<1x32x128xbf16>
    %198 = vector.shape_cast %197 : vector<1x32x128xbf16> to vector<32x128xbf16>
    %c1_52 = arith.constant 1 : index
    %c0_53 = arith.constant 0 : index
    %c0_54 = arith.constant 0 : index
    %199 = vector.load %arg5[%c1_52, %c0_53, %c0_54] : memref<2x1x128xf32, #tpu.memory_space<vmem>>, vector<1x1x128xf32>
    %200 = vector.shape_cast %199 : vector<1x1x128xf32> to vector<1x128xf32>
    %cst_55 = arith.constant dense<0.000000e+00> : vector<32x128xf32>
    %201 = tpu.matmul %194, %196, %cst_55 {dimension_numbers = #tpu.dot_dimension_numbers<[1], [0], [0], [1], [0, 0, 1, 1], [], []>} : vector<32x32xbf16>, vector<32x128xbf16>, vector<32x128xf32> -> vector<32x128xf32>
    %202 = vector.broadcast %200 : vector<1x128xf32> to vector<32x128xf32>
    %203 = arith.addf %201, %202 : vector<32x128xf32>
    %cst_56 = arith.constant 0.000000e+00 : f32
    %204 = vector.broadcast %cst_56 : f32 to vector<4x32xf32>
    %cst_57 = arith.constant 0.000000e+00 : f32
    %205 = vector.broadcast %cst_57 : f32 to vector<4x32xf32>
    %206 = vector.extract_strided_slice %203 {offsets = [0, 0], sizes = [4, 128], strides = [1, 1]} : vector<32x128xf32> to vector<4x128xf32>
    %207 = arith.truncf %204 : vector<4x32xf32> to vector<4x32xbf16>
    %cst_58 = arith.constant dense<0.000000e+00> : vector<4x128xf32>
    %208 = tpu.matmul %207, %198, %cst_58 {dimension_numbers = #tpu.dot_dimension_numbers<[1], [0], [0], [1], [0, 0, 1, 1], [], []>} : vector<4x32xbf16>, vector<32x128xbf16>, vector<4x128xf32> -> vector<4x128xf32>
    %209 = arith.addf %206, %208 : vector<4x128xf32>
    %210 = arith.negf %209 : vector<4x128xf32>
    %211 = math.exp %210 : vector<4x128xf32>
    %cst_59 = arith.constant 1.000000e+00 : f32
    %212 = vector.broadcast %cst_59 : f32 to vector<4x128xf32>
    %213 = arith.addf %212, %211 : vector<4x128xf32>
    %214 = arith.divf %212, %213 : vector<4x128xf32>
    %215 = math.tanh %209 : vector<4x128xf32>
    %216 = vector.extract_strided_slice %214 {offsets = [0, 0], sizes = [4, 32], strides = [1, 1]} : vector<4x128xf32> to vector<4x32xf32>
    %217 = vector.extract_strided_slice %214 {offsets = [0, 32], sizes = [4, 32], strides = [1, 1]} : vector<4x128xf32> to vector<4x32xf32>
    %218 = vector.extract_strided_slice %215 {offsets = [0, 64], sizes = [4, 32], strides = [1, 1]} : vector<4x128xf32> to vector<4x32xf32>
    %219 = vector.extract_strided_slice %214 {offsets = [0, 96], sizes = [4, 32], strides = [1, 1]} : vector<4x128xf32> to vector<4x32xf32>
    %220 = arith.mulf %217, %205 : vector<4x32xf32>
    %221 = arith.mulf %216, %218 : vector<4x32xf32>
    %222 = arith.addf %220, %221 : vector<4x32xf32>
    %223 = math.tanh %222 : vector<4x32xf32>
    %224 = arith.mulf %219, %223 : vector<4x32xf32>
    %225 = vector.extract_strided_slice %203 {offsets = [4, 0], sizes = [4, 128], strides = [1, 1]} : vector<32x128xf32> to vector<4x128xf32>
    %226 = arith.truncf %224 : vector<4x32xf32> to vector<4x32xbf16>
    %cst_60 = arith.constant dense<0.000000e+00> : vector<4x128xf32>
    %227 = tpu.matmul %226, %198, %cst_60 {dimension_numbers = #tpu.dot_dimension_numbers<[1], [0], [0], [1], [0, 0, 1, 1], [], []>} : vector<4x32xbf16>, vector<32x128xbf16>, vector<4x128xf32> -> vector<4x128xf32>
    %228 = arith.addf %225, %227 : vector<4x128xf32>
    %229 = arith.negf %228 : vector<4x128xf32>
    %230 = math.exp %229 : vector<4x128xf32>
    %cst_61 = arith.constant 1.000000e+00 : f32
    %231 = vector.broadcast %cst_61 : f32 to vector<4x128xf32>
    %232 = arith.addf %231, %230 : vector<4x128xf32>
    %233 = arith.divf %231, %232 : vector<4x128xf32>
    %234 = math.tanh %228 : vector<4x128xf32>
    %235 = vector.extract_strided_slice %233 {offsets = [0, 0], sizes = [4, 32], strides = [1, 1]} : vector<4x128xf32> to vector<4x32xf32>
    %236 = vector.extract_strided_slice %233 {offsets = [0, 32], sizes = [4, 32], strides = [1, 1]} : vector<4x128xf32> to vector<4x32xf32>
    %237 = vector.extract_strided_slice %234 {offsets = [0, 64], sizes = [4, 32], strides = [1, 1]} : vector<4x128xf32> to vector<4x32xf32>
    %238 = vector.extract_strided_slice %233 {offsets = [0, 96], sizes = [4, 32], strides = [1, 1]} : vector<4x128xf32> to vector<4x32xf32>
    %239 = arith.mulf %236, %222 : vector<4x32xf32>
    %240 = arith.mulf %235, %237 : vector<4x32xf32>
    %241 = arith.addf %239, %240 : vector<4x32xf32>
    %242 = math.tanh %241 : vector<4x32xf32>
    %243 = arith.mulf %238, %242 : vector<4x32xf32>
    %244 = vector.extract_strided_slice %203 {offsets = [8, 0], sizes = [4, 128], strides = [1, 1]} : vector<32x128xf32> to vector<4x128xf32>
    %245 = arith.truncf %243 : vector<4x32xf32> to vector<4x32xbf16>
    %cst_62 = arith.constant dense<0.000000e+00> : vector<4x128xf32>
    %246 = tpu.matmul %245, %198, %cst_62 {dimension_numbers = #tpu.dot_dimension_numbers<[1], [0], [0], [1], [0, 0, 1, 1], [], []>} : vector<4x32xbf16>, vector<32x128xbf16>, vector<4x128xf32> -> vector<4x128xf32>
    %247 = arith.addf %244, %246 : vector<4x128xf32>
    %248 = arith.negf %247 : vector<4x128xf32>
    %249 = math.exp %248 : vector<4x128xf32>
    %cst_63 = arith.constant 1.000000e+00 : f32
    %250 = vector.broadcast %cst_63 : f32 to vector<4x128xf32>
    %251 = arith.addf %250, %249 : vector<4x128xf32>
    %252 = arith.divf %250, %251 : vector<4x128xf32>
    %253 = math.tanh %247 : vector<4x128xf32>
    %254 = vector.extract_strided_slice %252 {offsets = [0, 0], sizes = [4, 32], strides = [1, 1]} : vector<4x128xf32> to vector<4x32xf32>
    %255 = vector.extract_strided_slice %252 {offsets = [0, 32], sizes = [4, 32], strides = [1, 1]} : vector<4x128xf32> to vector<4x32xf32>
    %256 = vector.extract_strided_slice %253 {offsets = [0, 64], sizes = [4, 32], strides = [1, 1]} : vector<4x128xf32> to vector<4x32xf32>
    %257 = vector.extract_strided_slice %252 {offsets = [0, 96], sizes = [4, 32], strides = [1, 1]} : vector<4x128xf32> to vector<4x32xf32>
    %258 = arith.mulf %255, %241 : vector<4x32xf32>
    %259 = arith.mulf %254, %256 : vector<4x32xf32>
    %260 = arith.addf %258, %259 : vector<4x32xf32>
    %261 = math.tanh %260 : vector<4x32xf32>
    %262 = arith.mulf %257, %261 : vector<4x32xf32>
    %263 = vector.extract_strided_slice %203 {offsets = [12, 0], sizes = [4, 128], strides = [1, 1]} : vector<32x128xf32> to vector<4x128xf32>
    %264 = arith.truncf %262 : vector<4x32xf32> to vector<4x32xbf16>
    %cst_64 = arith.constant dense<0.000000e+00> : vector<4x128xf32>
    %265 = tpu.matmul %264, %198, %cst_64 {dimension_numbers = #tpu.dot_dimension_numbers<[1], [0], [0], [1], [0, 0, 1, 1], [], []>} : vector<4x32xbf16>, vector<32x128xbf16>, vector<4x128xf32> -> vector<4x128xf32>
    %266 = arith.addf %263, %265 : vector<4x128xf32>
    %267 = arith.negf %266 : vector<4x128xf32>
    %268 = math.exp %267 : vector<4x128xf32>
    %cst_65 = arith.constant 1.000000e+00 : f32
    %269 = vector.broadcast %cst_65 : f32 to vector<4x128xf32>
    %270 = arith.addf %269, %268 : vector<4x128xf32>
    %271 = arith.divf %269, %270 : vector<4x128xf32>
    %272 = math.tanh %266 : vector<4x128xf32>
    %273 = vector.extract_strided_slice %271 {offsets = [0, 0], sizes = [4, 32], strides = [1, 1]} : vector<4x128xf32> to vector<4x32xf32>
    %274 = vector.extract_strided_slice %271 {offsets = [0, 32], sizes = [4, 32], strides = [1, 1]} : vector<4x128xf32> to vector<4x32xf32>
    %275 = vector.extract_strided_slice %272 {offsets = [0, 64], sizes = [4, 32], strides = [1, 1]} : vector<4x128xf32> to vector<4x32xf32>
    %276 = vector.extract_strided_slice %271 {offsets = [0, 96], sizes = [4, 32], strides = [1, 1]} : vector<4x128xf32> to vector<4x32xf32>
    %277 = arith.mulf %274, %260 : vector<4x32xf32>
    %278 = arith.mulf %273, %275 : vector<4x32xf32>
    %279 = arith.addf %277, %278 : vector<4x32xf32>
    %280 = math.tanh %279 : vector<4x32xf32>
    %281 = arith.mulf %276, %280 : vector<4x32xf32>
    %282 = vector.extract_strided_slice %203 {offsets = [16, 0], sizes = [4, 128], strides = [1, 1]} : vector<32x128xf32> to vector<4x128xf32>
    %283 = arith.truncf %281 : vector<4x32xf32> to vector<4x32xbf16>
    %cst_66 = arith.constant dense<0.000000e+00> : vector<4x128xf32>
    %284 = tpu.matmul %283, %198, %cst_66 {dimension_numbers = #tpu.dot_dimension_numbers<[1], [0], [0], [1], [0, 0, 1, 1], [], []>} : vector<4x32xbf16>, vector<32x128xbf16>, vector<4x128xf32> -> vector<4x128xf32>
    %285 = arith.addf %282, %284 : vector<4x128xf32>
    %286 = arith.negf %285 : vector<4x128xf32>
    %287 = math.exp %286 : vector<4x128xf32>
    %cst_67 = arith.constant 1.000000e+00 : f32
    %288 = vector.broadcast %cst_67 : f32 to vector<4x128xf32>
    %289 = arith.addf %288, %287 : vector<4x128xf32>
    %290 = arith.divf %288, %289 : vector<4x128xf32>
    %291 = math.tanh %285 : vector<4x128xf32>
    %292 = vector.extract_strided_slice %290 {offsets = [0, 0], sizes = [4, 32], strides = [1, 1]} : vector<4x128xf32> to vector<4x32xf32>
    %293 = vector.extract_strided_slice %290 {offsets = [0, 32], sizes = [4, 32], strides = [1, 1]} : vector<4x128xf32> to vector<4x32xf32>
    %294 = vector.extract_strided_slice %291 {offsets = [0, 64], sizes = [4, 32], strides = [1, 1]} : vector<4x128xf32> to vector<4x32xf32>
    %295 = vector.extract_strided_slice %290 {offsets = [0, 96], sizes = [4, 32], strides = [1, 1]} : vector<4x128xf32> to vector<4x32xf32>
    %296 = arith.mulf %293, %279 : vector<4x32xf32>
    %297 = arith.mulf %292, %294 : vector<4x32xf32>
    %298 = arith.addf %296, %297 : vector<4x32xf32>
    %299 = math.tanh %298 : vector<4x32xf32>
    %300 = arith.mulf %295, %299 : vector<4x32xf32>
    %301 = vector.extract_strided_slice %203 {offsets = [20, 0], sizes = [4, 128], strides = [1, 1]} : vector<32x128xf32> to vector<4x128xf32>
    %302 = arith.truncf %300 : vector<4x32xf32> to vector<4x32xbf16>
    %cst_68 = arith.constant dense<0.000000e+00> : vector<4x128xf32>
    %303 = tpu.matmul %302, %198, %cst_68 {dimension_numbers = #tpu.dot_dimension_numbers<[1], [0], [0], [1], [0, 0, 1, 1], [], []>} : vector<4x32xbf16>, vector<32x128xbf16>, vector<4x128xf32> -> vector<4x128xf32>
    %304 = arith.addf %301, %303 : vector<4x128xf32>
    %305 = arith.negf %304 : vector<4x128xf32>
    %306 = math.exp %305 : vector<4x128xf32>
    %cst_69 = arith.constant 1.000000e+00 : f32
    %307 = vector.broadcast %cst_69 : f32 to vector<4x128xf32>
    %308 = arith.addf %307, %306 : vector<4x128xf32>
    %309 = arith.divf %307, %308 : vector<4x128xf32>
    %310 = math.tanh %304 : vector<4x128xf32>
    %311 = vector.extract_strided_slice %309 {offsets = [0, 0], sizes = [4, 32], strides = [1, 1]} : vector<4x128xf32> to vector<4x32xf32>
    %312 = vector.extract_strided_slice %309 {offsets = [0, 32], sizes = [4, 32], strides = [1, 1]} : vector<4x128xf32> to vector<4x32xf32>
    %313 = vector.extract_strided_slice %310 {offsets = [0, 64], sizes = [4, 32], strides = [1, 1]} : vector<4x128xf32> to vector<4x32xf32>
    %314 = vector.extract_strided_slice %309 {offsets = [0, 96], sizes = [4, 32], strides = [1, 1]} : vector<4x128xf32> to vector<4x32xf32>
    %315 = arith.mulf %312, %298 : vector<4x32xf32>
    %316 = arith.mulf %311, %313 : vector<4x32xf32>
    %317 = arith.addf %315, %316 : vector<4x32xf32>
    %318 = math.tanh %317 : vector<4x32xf32>
    %319 = arith.mulf %314, %318 : vector<4x32xf32>
    %320 = vector.extract_strided_slice %203 {offsets = [24, 0], sizes = [4, 128], strides = [1, 1]} : vector<32x128xf32> to vector<4x128xf32>
    %321 = arith.truncf %319 : vector<4x32xf32> to vector<4x32xbf16>
    %cst_70 = arith.constant dense<0.000000e+00> : vector<4x128xf32>
    %322 = tpu.matmul %321, %198, %cst_70 {dimension_numbers = #tpu.dot_dimension_numbers<[1], [0], [0], [1], [0, 0, 1, 1], [], []>} : vector<4x32xbf16>, vector<32x128xbf16>, vector<4x128xf32> -> vector<4x128xf32>
    %323 = arith.addf %320, %322 : vector<4x128xf32>
    %324 = arith.negf %323 : vector<4x128xf32>
    %325 = math.exp %324 : vector<4x128xf32>
    %cst_71 = arith.constant 1.000000e+00 : f32
    %326 = vector.broadcast %cst_71 : f32 to vector<4x128xf32>
    %327 = arith.addf %326, %325 : vector<4x128xf32>
    %328 = arith.divf %326, %327 : vector<4x128xf32>
    %329 = math.tanh %323 : vector<4x128xf32>
    %330 = vector.extract_strided_slice %328 {offsets = [0, 0], sizes = [4, 32], strides = [1, 1]} : vector<4x128xf32> to vector<4x32xf32>
    %331 = vector.extract_strided_slice %328 {offsets = [0, 32], sizes = [4, 32], strides = [1, 1]} : vector<4x128xf32> to vector<4x32xf32>
    %332 = vector.extract_strided_slice %329 {offsets = [0, 64], sizes = [4, 32], strides = [1, 1]} : vector<4x128xf32> to vector<4x32xf32>
    %333 = vector.extract_strided_slice %328 {offsets = [0, 96], sizes = [4, 32], strides = [1, 1]} : vector<4x128xf32> to vector<4x32xf32>
    %334 = arith.mulf %331, %317 : vector<4x32xf32>
    %335 = arith.mulf %330, %332 : vector<4x32xf32>
    %336 = arith.addf %334, %335 : vector<4x32xf32>
    %337 = math.tanh %336 : vector<4x32xf32>
    %338 = arith.mulf %333, %337 : vector<4x32xf32>
    %339 = vector.extract_strided_slice %203 {offsets = [28, 0], sizes = [4, 128], strides = [1, 1]} : vector<32x128xf32> to vector<4x128xf32>
    %340 = arith.truncf %338 : vector<4x32xf32> to vector<4x32xbf16>
    %cst_72 = arith.constant dense<0.000000e+00> : vector<4x128xf32>
    %341 = tpu.matmul %340, %198, %cst_72 {dimension_numbers = #tpu.dot_dimension_numbers<[1], [0], [0], [1], [0, 0, 1, 1], [], []>} : vector<4x32xbf16>, vector<32x128xbf16>, vector<4x128xf32> -> vector<4x128xf32>
    %342 = arith.addf %339, %341 : vector<4x128xf32>
    %343 = arith.negf %342 : vector<4x128xf32>
    %344 = math.exp %343 : vector<4x128xf32>
    %cst_73 = arith.constant 1.000000e+00 : f32
    %345 = vector.broadcast %cst_73 : f32 to vector<4x128xf32>
    %346 = arith.addf %345, %344 : vector<4x128xf32>
    %347 = arith.divf %345, %346 : vector<4x128xf32>
    %348 = math.tanh %342 : vector<4x128xf32>
    %349 = vector.extract_strided_slice %347 {offsets = [0, 0], sizes = [4, 32], strides = [1, 1]} : vector<4x128xf32> to vector<4x32xf32>
    %350 = vector.extract_strided_slice %347 {offsets = [0, 32], sizes = [4, 32], strides = [1, 1]} : vector<4x128xf32> to vector<4x32xf32>
    %351 = vector.extract_strided_slice %348 {offsets = [0, 64], sizes = [4, 32], strides = [1, 1]} : vector<4x128xf32> to vector<4x32xf32>
    %352 = vector.extract_strided_slice %347 {offsets = [0, 96], sizes = [4, 32], strides = [1, 1]} : vector<4x128xf32> to vector<4x32xf32>
    %353 = arith.mulf %350, %336 : vector<4x32xf32>
    %354 = arith.mulf %349, %351 : vector<4x32xf32>
    %355 = arith.addf %353, %354 : vector<4x32xf32>
    %356 = math.tanh %355 : vector<4x32xf32>
    %357 = arith.mulf %352, %356 : vector<4x32xf32>
    %c1_74 = arith.constant 1 : index
    %c0_75 = arith.constant 0 : index
    %c0_76 = arith.constant 0 : index
    %358 = vector.load %arg6[%c1_74, %c0_75, %c0_76] : memref<2x4x32xf32, #tpu.memory_space<vmem>>, vector<1x4x32xf32>
    %359 = vector.shape_cast %358 : vector<1x4x32xf32> to vector<4x32xf32>
    %360 = vector.shape_cast %357 : vector<4x32xf32> to vector<1x4x32xf32>
    tpu.vector_store %arg6[%c1_74, %c0_75, %c0_76], %360 {strides = array<i32>} : memref<2x4x32xf32, #tpu.memory_space<vmem>>, vector<1x4x32xf32>,
    %c1_77 = arith.constant 1 : index
    %c0_78 = arith.constant 0 : index
    %c0_79 = arith.constant 0 : index
    %361 = vector.load %arg7[%c1_77, %c0_78, %c0_79] : memref<2x4x32xf32, #tpu.memory_space<vmem>>, vector<1x4x32xf32>
    %362 = vector.shape_cast %361 : vector<1x4x32xf32> to vector<4x32xf32>
    %363 = vector.shape_cast %355 : vector<4x32xf32> to vector<1x4x32xf32>
    tpu.vector_store %arg7[%c1_77, %c0_78, %c0_79], %363 {strides = array<i32>} : memref<2x4x32xf32, #tpu.memory_space<vmem>>, vector<1x4x32xf32>,
    return
  }
}

</mosaic_0001>

<llo_original>
// kernel: tpu_custom_call.1
$region0: #{tpu_custom_call.1}
  #allocation0 [shape = 'u32[]', space=smem, size = 0x4, offset = 0x4, fixed_abs, tag = 'smem constant byte address 0x4 - core index']
  #allocation1 [shape = 'u32[72,128]{1,0:T(1,128)}', space=vmem, size = 0x9000, scoped, tag = 'internal scratch']
  #allocation2 [shape = 'bf16[32,32]{1,0:T(8,128)(2,1)}', space=vmem, size = 0x2000, scoped, tag = 'scratch operand']
  %s0 = inlined_call_operand.vmem [shape: s32[32,1], index: 0, kind: input, shape index: {}]
  %s1 = inlined_call_operand.vmem [shape: bf16[50,32], index: 1, kind: input, shape index: {}]
  %s2 = inlined_call_operand.vmem [shape: bf16[32,128], index: 2, kind: input, shape index: {}]
  %s3 = inlined_call_operand.vmem [shape: bf16[1,32,128], index: 3, kind: input, shape index: {}]
  %s4 = inlined_call_operand.vmem [shape: bf16[2,32,128], index: 4, kind: input, shape index: {}]
  %s5 = inlined_call_operand.vmem [shape: f32[2,1,128], index: 5, kind: input, shape index: {}]
  %s6 = inlined_call_operand.hbm [shape: f32[2,4,32], index: 6, kind: output, shape index: {0}]
  %s7 = inlined_call_operand.hbm [shape: f32[2,4,32], index: 7, kind: output, shape index: {1}]
  %8 = xla_tuple %s6, %s7
  %s9 = sld [smem:[#allocation0]]
  $region42: #{tpu_custom_call.1} parent=0
    _
  %s11 = ssub.s32 1, %s9
  %s12 = scalar_select 0, %s11, %s9
  $region1: #{tpu_custom_call.1} parent=0
    #allocation3 [shape = 'u8[4096]{0}', space=vmem, size = 0x1000, scoped, tag = 'output window, operand 0, single buffered']
    #allocation4 [shape = 's32[1]{0}', space=sflag, size = 0x4, scoped, tag = 'scoped memory for tpu_custom_call.1']
    #allocation5 [shape = 'u8[4096]{0}', space=vmem, size = 0x1000, scoped, tag = 'output window, operand 1, single buffered']
    #allocation6 [shape = 's32[1]{0}', space=sflag, size = 0x4, scoped, tag = 'scoped memory for tpu_custom_call.1']
    %13 = vsyncpa [#allocation4], 0
    %14 = vsyncpa [#allocation6], 0
    // Predicated region
    $region2: #{tpu_custom_call.1} parent=1 // pred_check
      _
    $region3: #{tpu_custom_call.1} parent=1 // pred_check_branch
      %16 = sbr.rel (0) target = $region5
    $region4: #{tpu_custom_call.1} parent=1 // pred_region
      _
    $region5: #{tpu_custom_call.1} parent=1 // pred_fallthru
      _
    // Predicated region
    $region6: #{tpu_custom_call.1} parent=1 // pred_check
      _
    $region7: #{tpu_custom_call.1} parent=1 // pred_check_branch
      %18 = sbr.rel (0) target = $region9
    $region8: #{tpu_custom_call.1} parent=1 // pred_region
      _
    $region9: #{tpu_custom_call.1} parent=1 // pred_fallthru
      _
    // Predicated region
    $region10: #{tpu_custom_call.1} parent=1 // pred_check
      _
    $region11: #{tpu_custom_call.1} parent=1 // pred_check_branch
      %20 = sbr.rel (0) target = $region13
    $region12: #{tpu_custom_call.1} parent=1 // pred_region
      _
    $region13: #{tpu_custom_call.1} parent=1 // pred_fallthru
      _
    // Predicated region
    $region14: #{tpu_custom_call.1} parent=1 // pred_check
      _
    $region15: #{tpu_custom_call.1} parent=1 // pred_check_branch
      %22 = sbr.rel (0) target = $region17
    $region16: #{tpu_custom_call.1} parent=1 // pred_region
      _
    $region17: #{tpu_custom_call.1} parent=1 // pred_fallthru
      _
    // Predicated region
    $region18: #{tpu_custom_call.1} parent=1 // pred_check
      _
    $region19: #{tpu_custom_call.1} parent=1 // pred_check_branch
      %24 = sbr.rel (0) target = $region21
    $region20: #{tpu_custom_call.1} parent=1 // pred_region
      _
    $region21: #{tpu_custom_call.1} parent=1 // pred_fallthru
      _
    // Predicated region
    $region22: #{tpu_custom_call.1} parent=1 // pred_check
      _
    $region23: #{tpu_custom_call.1} parent=1 // pred_check_branch
      %26 = sbr.rel (0) target = $region25
    $region24: #{tpu_custom_call.1} parent=1 // pred_region
      _
    $region25: #{tpu_custom_call.1} parent=1 // pred_fallthru
      _
    %v28 = vld [vmem:[%s0] sm:$0xff]
    %v29 = vld [vmem:[%s0 + $0x8] sm:$0xff]
    %v30 = vld [vmem:[%s0 + $0x10] sm:$0xff]
    %v31 = vld [vmem:[%s0 + $0x18] sm:$0xff]
    %v32 = vlaneseq
    %v33 = vand.u32 %v32, 127
    %34 = vset.pattern.permute.xlu0 0
    %35 = vperm.xlu0 %34, %v28
    %v36 = vpop.permute.xlu0 %35
    %37 = vset.pattern.permute.xlu0 0
    %38 = vperm.xlu0 %37, %v29
    %v39 = vpop.permute.xlu0 %38
    %40 = vset.pattern.permute.xlu0 0
    %41 = vperm.xlu0 %40, %v30
    %v42 = vpop.permute.xlu0 %41
    %43 = vset.pattern.permute.xlu0 0
    %44 = vperm.xlu0 %43, %v31
    %v45 = vpop.permute.xlu0 %44
    %vm46 = vcmp.eq.s32.totalorder %v36, %v33
    %vm47 = vcmp.eq.s32.totalorder %v39, %v33
    %vm48 = vcmp.eq.s32.totalorder %v42, %v33
    %vm49 = vcmp.eq.s32.totalorder %v45, %v33
    %v50 = vsel %vm46, 1, 0
    %v51 = vsel %vm47, 1, 0
    %v52 = vsel %vm48, 1, 0
    %v53 = vsel %vm49, 1, 0
    %v54 = vcvt.s32.f32 %v50
    %v55 = vcvt.s32.f32 %v51
    %v56 = vcvt.s32.f32 %v52
    %v57 = vcvt.s32.f32 %v53
    %v58 = vpack.c.bf16 %v55, %v54
    %v59 = vpack.c.bf16 %v57, %v56
    %v60 = vld [vmem:[%s1] sm:$0xf]
    %v61 = vld [vmem:[%s1 + $0x4] sm:$0xf]
    %v62 = vld [vmem:[%s1 + $0x8] sm:$0xf]
    %v63 = vld [vmem:[%s1 + $0xc] sm:$0xf]
    %v64 = vld [vmem:[%s1 + $0x10] sm:$0xf]
    %v65 = vld [vmem:[%s1 + $0x14] sm:$0xf]
    %v66 = vld [vmem:[%s1 + $0x18] sm:$0x1]
    %v74 = vunpack.c.l.b16 %v60
    %v75 = vunpack.c.l.b16 %v61
    %v76 = vunpack.c.l.b16 %v62
    %v77 = vunpack.c.l.b16 %v63
    %v78 = vunpack.c.l.b16 %v64
    %v79 = vunpack.c.l.b16 %v65
    %v80 = vunpack.c.l.b16 %v66
    %v81 = vpack.c.b16 %v75, %v74
    %v82 = vpack.c.b16 %v77, %v76
    %v83 = vpack.c.b16 %v79, %v78
    %v84 = vpack.c.b16 %v80, %v80
    %vm88 = vcmask 408576
    %v90 = vsel %vm88, %v58, 0
    %v93 = vsel %vm88, %v59, 0
    %vm95 = vcmask 1040384
    %v97 = vsel %vm95, %v84, 0
    %99 = vmatpush.bf16.msra.mxu0 0
    %100 = vmatpush.bf16.msra.mxu0 0
    %101 = vmatpush.bf16.msra.mxu0 0
    %102 = vmatpush.bf16.msra.mxu0 0
    %103 = vmatpush.bf16.msra.mxu0 %v97
    %104 = vmatpush.bf16.msra.mxu0 %v83
    %105 = vmatpush.bf16.msra.mxu0 %v82
    %106 = vmatpush.bf16.msra.mxu0 %v81
    %107 = vmatmul.bf16.gmra.mxu0 %v90
    %v108 = vpop.f32.mrf.mxu0
    %v109 = vadd.f32 0.0, %v108
    %v110 = vpop.f32.mrf.mxu0
    %v111 = vadd.f32 0.0, %v110
    %112 = vmatmul.bf16.gmra.mxu0 %v93
    %v113 = vpop.f32.mrf.mxu0
    %v114 = vadd.f32 0.0, %v113
    %v115 = vpop.f32.mrf.mxu0
    %v116 = vadd.f32 0.0, %v115
    %117 = vdwg.mxu0
    %v118 = vpack.c.bf16 %v111, %v109
    %v119 = vpack.c.bf16 %v116, %v114
    %v120 = vld [vmem:[%s2] sm:$0xf]
    %v121 = vld [vmem:[%s2 + $0x4] sm:$0xf]
    %v122 = vld [vmem:[%s2 + $0x8] sm:$0xf]
    %v123 = vld [vmem:[%s2 + $0xc] sm:$0xf]
    %v124 = vld [vmem:[%s4] sm:$0xf]
    %v125 = vld [vmem:[%s4 + $0x4] sm:$0xf]
    %v126 = vld [vmem:[%s4 + $0x8] sm:$0xf]
    %v127 = vld [vmem:[%s4 + $0xc] sm:$0xf]
    %v128 = vld [vmem:[%s5] sm:$0x1]
    %v130 = vperm.slane %v128, 0
    %v136 = vunpack.c.l.b16 %v120
    %v137 = vunpack.c.l.b16 %v121
    %v138 = vunpack.c.l.b16 %v122
    %v139 = vunpack.c.l.b16 %v123
    %v140 = vpack.c.b16 %v137, %v136
    %v141 = vpack.c.b16 %v139, %v138
    %vm144 = vcmask 261120
    %v146 = vsel %vm144, %v118, 0
    %v149 = vsel %vm144, %v119, 0
    %151 = vmatpush.bf16.msra.mxu0 0
    %152 = vmatpush.bf16.msra.mxu0 0
    %153 = vmatpush.bf16.msra.mxu0 0
    %154 = vmatpush.bf16.msra.mxu0 0
    %155 = vmatpush.bf16.msra.mxu0 0
    %156 = vmatpush.bf16.msra.mxu0 0
    %157 = vmatpush.bf16.msra.mxu0 %v141
    %158 = vmatpush.bf16.msra.mxu0 %v140
    %159 = vmatmul.bf16.gmra.mxu0 %v146
    %v160 = vpop.f32.mrf.mxu0
    %v161 = vadd.f32 %v130, %v160
    %v162 = vpop.f32.mrf.mxu0
    %v163 = vadd.f32 %v130, %v162
    %164 = vmatmul.bf16.gmra.mxu0 %v149
    %v165 = vpop.f32.mrf.mxu0
    %v166 = vadd.f32 %v130, %v165
    %v167 = vpop.f32.mrf.mxu0
    %v168 = vadd.f32 %v130, %v167
    %169 = vdwg.mxu0
    %v174 = vunpack.c.l.b16 %v124
    %v175 = vunpack.c.l.b16 %v125
    %v176 = vunpack.c.l.b16 %v126
    %v177 = vunpack.c.l.b16 %v127
    %v178 = vpack.c.b16 %v175, %v174
    %v179 = vpack.c.b16 %v177, %v176
    %v183 = vsel %vm144, 0, 0
    %185 = vmatpush.bf16.msra.mxu0 0
    %186 = vmatpush.bf16.msra.mxu0 0
    %187 = vmatpush.bf16.msra.mxu0 0
    %188 = vmatpush.bf16.msra.mxu0 0
    %189 = vmatpush.bf16.msra.mxu0 0
    %190 = vmatpush.bf16.msra.mxu0 0
    %191 = vmatpush.bf16.msra.mxu0 %v179
    %192 = vmatpush.bf16.msra.mxu0 %v178
    %193 = vmatmul.bf16.gmra.mxu0 %v183
    %v194 = vpop.f32.mrf.mxu0
    %v195 = vadd.f32 0.0, %v194
    %v196 = vpop.f32.mrf.mxu0
    %197 = vdwg.mxu0
    %v198 = vadd.f32 %v161, %v195
    %v199 = vxor.u32 %v198, 2147483648
    %v200 = vmul.f32 %v199, 1.442695
    %v201 = vpow.pop %v200
    %v202 = vadd.f32 %v201, 1.0
    %v203 = vrcp.pop %v202
    %v204 = vmul.f32 %v202, %v203
    %v205 = vsub.f32 1.0, %v204
    %v206 = vmul.f32 %v203, %v205
    %v207 = vadd.f32 %v203, %v206
    %vm208 = vweird.f32 %v202
    %vm209 = vweird.f32 %v203
    %vm210 = vmor %vm208, %vm209
    %v211 = vsel %vm210, %v203, %v207
    %v212 = vand.u32 2147483647, %v202
    %vm213 = vcmp.eq.f32.partialorder %v212, 8.507059e+37
    %v214 = vand.u32 %v202, 2147483648
    %v215 = vor.u32 1.1754944e-38, %v214
    %v216 = vsel %vm213, %v215, %v211
    %v217 = vmul.f32 1.0, %v216
    %v218 = vtanh.pop %v198
    %v219 = vmul.f32 %v217, 0.0
    %221 = vrot.lane.b32.xlu0 %v218, 64
    %v222 = vpop.permute.xlu0 %221
    %v224 = vmul.f32 %v217, %v222
    %226 = vrot.lane.b32.xlu0 %v224, 32
    %v227 = vpop.permute.xlu0 %226
    %v229 = vadd.f32 %v219, %v227
    %v230 = vtanh.pop %v229
    %232 = vrot.lane.b32.xlu0 %v230, 64
    %v233 = vpop.permute.xlu0 %232
    %v235 = vmul.f32 %v217, %v233
    %v236 = vpack.c.bf16 %v235, %v235
    %238 = vrot.lane.b32.xlu0 %v236, 32
    %v239 = vpop.permute.xlu0 %238
    %vm241 = vcmask 254976
    %242 = vst.msk [vmem:[#allocation2] sm:$0x3] %vm241, %v239
    %v243 = vunpack.c.l.b16 %v236
    %v244 = vpack.c.b16 %v243, %v243
    %245 = vrot.lane.b32.xlu0 %v244, 32
    %v246 = vpop.permute.xlu0 %245
    %v248 = vsel %vm144, %v246, 0
    %250 = vmatpush.bf16.msra.mxu0 0
    %251 = vmatpush.bf16.msra.mxu0 0
    %252 = vmatpush.bf16.msra.mxu0 0
    %253 = vmatpush.bf16.msra.mxu0 0
    %254 = vmatpush.bf16.msra.mxu0 0
    %255 = vmatpush.bf16.msra.mxu0 0
    %256 = vmatpush.bf16.msra.mxu0 %v179
    %257 = vmatpush.bf16.msra.mxu0 %v178
    %258 = vmatmul.bf16.gmra.mxu0 %v248
    %v259 = vpop.f32.mrf.mxu0
    %v260 = vadd.f32 0.0, %v259
    %v261 = vpop.f32.mrf.mxu0
    %262 = vdwg.mxu0
    %v264 = vrot.slane %v260, 4
    %v266 = vadd.f32 %v161, %v264
    %v267 = vxor.u32 %v266, 2147483648
    %v268 = vmul.f32 %v267, 1.442695
    %v269 = vpow.pop %v268
    %v270 = vadd.f32 %v269, 1.0
    %v271 = vrcp.pop %v270
    %v272 = vmul.f32 %v270, %v271
    %v273 = vsub.f32 1.0, %v272
    %v274 = vmul.f32 %v271, %v273
    %v275 = vadd.f32 %v271, %v274
    %vm276 = vweird.f32 %v270
    %vm277 = vweird.f32 %v271
    %vm278 = vmor %vm276, %vm277
    %v279 = vsel %vm278, %v271, %v275
    %v280 = vand.u32 2147483647, %v270
    %vm281 = vcmp.eq.f32.partialorder %v280, 8.507059e+37
    %v282 = vand.u32 %v270, 2147483648
    %v283 = vor.u32 1.1754944e-38, %v282
    %v284 = vsel %vm281, %v283, %v279
    %v285 = vmul.f32 1.0, %v284
    %v286 = vtanh.pop %v266
    %v288 = vrot.slane %v229, 4
    %v290 = vmul.f32 %v285, %v288
    %292 = vrot.lane.b32.xlu0 %v286, 64
    %v293 = vpop.permute.xlu0 %292
    %v295 = vmul.f32 %v285, %v293
    %297 = vrot.lane.b32.xlu0 %v295, 32
    %v298 = vpop.permute.xlu0 %297
    %v300 = vadd.f32 %v290, %v298
    %v301 = vtanh.pop %v300
    %303 = vrot.lane.b32.xlu0 %v301, 64
    %v304 = vpop.permute.xlu0 %303
    %v306 = vmul.f32 %v285, %v304
    %v307 = vpack.c.bf16 %v306, %v306
    %309 = vrot.lane.b32.xlu0 %v307, 32
    %v310 = vpop.permute.xlu0 %309
    %vm312 = vcmask 257026
    %313 = vst.msk [vmem:[#allocation2] sm:$0xc] %vm312, %v310
    %v314 = vunpack.c.l.b16 %v307
    %v315 = vpack.c.b16 %v314, %v314
    %v316 = vrot.slane %v315, 2
    %317 = vrot.lane.b32.xlu0 %v316, 32
    %v318 = vpop.permute.xlu0 %317
    %v320 = vsel %vm144, %v318, 0
    %322 = vmatpush.bf16.msra.mxu0 0
    %323 = vmatpush.bf16.msra.mxu0 0
    %324 = vmatpush.bf16.msra.mxu0 0
    %325 = vmatpush.bf16.msra.mxu0 0
    %326 = vmatpush.bf16.msra.mxu0 0
    %327 = vmatpush.bf16.msra.mxu0 0
    %328 = vmatpush.bf16.msra.mxu0 %v179
    %329 = vmatpush.bf16.msra.mxu0 %v178
    %330 = vmatmul.bf16.gmra.mxu0 %v320
    %v331 = vpop.f32.mrf.mxu0
    %v332 = vadd.f32 0.0, %v331
    %v333 = vpop.f32.mrf.mxu0
    %334 = vdwg.mxu0
    %v335 = vadd.f32 %v163, %v332
    %v336 = vxor.u32 %v335, 2147483648
    %v337 = vmul.f32 %v336, 1.442695
    %v338 = vpow.pop %v337
    %v339 = vadd.f32 %v338, 1.0
    %v340 = vrcp.pop %v339
    %v341 = vmul.f32 %v339, %v340
    %v342 = vsub.f32 1.0, %v341
    %v343 = vmul.f32 %v340, %v342
    %v344 = vadd.f32 %v340, %v343
    %vm345 = vweird.f32 %v339
    %vm346 = vweird.f32 %v340
    %vm347 = vmor %vm345, %vm346
    %v348 = vsel %vm347, %v340, %v344
    %v349 = vand.u32 2147483647, %v339
    %vm350 = vcmp.eq.f32.partialorder %v349, 8.507059e+37
    %v351 = vand.u32 %v339, 2147483648
    %v352 = vor.u32 1.1754944e-38, %v351
    %v353 = vsel %vm350, %v352, %v348
    %v354 = vmul.f32 1.0, %v353
    %v355 = vtanh.pop %v335
    %v357 = vrot.slane %v300, 4
    %v359 = vmul.f32 %v354, %v357
    %361 = vrot.lane.b32.xlu0 %v355, 64
    %v362 = vpop.permute.xlu0 %361
    %v364 = vmul.f32 %v354, %v362
    %366 = vrot.lane.b32.xlu0 %v364, 32
    %v367 = vpop.permute.xlu0 %366
    %v369 = vadd.f32 %v359, %v367
    %v370 = vtanh.pop %v369
    %372 = vrot.lane.b32.xlu0 %v370, 64
    %v373 = vpop.permute.xlu0 %372
    %v375 = vmul.f32 %v354, %v373
    %v376 = vpack.c.bf16 %v375, %v375
    %378 = vrot.lane.b32.xlu0 %v376, 32
    %v379 = vpop.permute.xlu0 %378
    %381 = vst.msk [vmem:[#allocation2 + $0x4] sm:$0x3] %vm241, %v379
    %v382 = vunpack.c.l.b16 %v376
    %v383 = vpack.c.b16 %v382, %v382
    %384 = vrot.lane.b32.xlu0 %v383, 32
    %v385 = vpop.permute.xlu0 %384
    %v387 = vsel %vm144, %v385, 0
    %389 = vmatpush.bf16.msra.mxu0 0
    %390 = vmatpush.bf16.msra.mxu0 0
    %391 = vmatpush.bf16.msra.mxu0 0
    %392 = vmatpush.bf16.msra.mxu0 0
    %393 = vmatpush.bf16.msra.mxu0 0
    %394 = vmatpush.bf16.msra.mxu0 0
    %395 = vmatpush.bf16.msra.mxu0 %v179
    %396 = vmatpush.bf16.msra.mxu0 %v178
    %397 = vmatmul.bf16.gmra.mxu0 %v387
    %v398 = vpop.f32.mrf.mxu0
    %v399 = vadd.f32 0.0, %v398
    %v400 = vpop.f32.mrf.mxu0
    %401 = vdwg.mxu0
    %v403 = vrot.slane %v399, 4
    %v405 = vadd.f32 %v163, %v403
    %v406 = vxor.u32 %v405, 2147483648
    %v407 = vmul.f32 %v406, 1.442695
    %v408 = vpow.pop %v407
    %v409 = vadd.f32 %v408, 1.0
    %v410 = vrcp.pop %v409
    %v411 = vmul.f32 %v409, %v410
    %v412 = vsub.f32 1.0, %v411
    %v413 = vmul.f32 %v410, %v412
    %v414 = vadd.f32 %v410, %v413
    %vm415 = vweird.f32 %v409
    %vm416 = vweird.f32 %v410
    %vm417 = vmor %vm415, %vm416
    %v418 = vsel %vm417, %v410, %v414
    %v419 = vand.u32 2147483647, %v409
    %vm420 = vcmp.eq.f32.partialorder %v419, 8.507059e+37
    %v421 = vand.u32 %v409, 2147483648
    %v422 = vor.u32 1.1754944e-38, %v421
    %v423 = vsel %vm420, %v422, %v418
    %v424 = vmul.f32 1.0, %v423
    %v425 = vtanh.pop %v405
    %v427 = vrot.slane %v369, 4
    %v429 = vmul.f32 %v424, %v427
    %431 = vrot.lane.b32.xlu0 %v425, 64
    %v432 = vpop.permute.xlu0 %431
    %v434 = vmul.f32 %v424, %v432
    %436 = vrot.lane.b32.xlu0 %v434, 32
    %v437 = vpop.permute.xlu0 %436
    %v439 = vadd.f32 %v429, %v437
    %v440 = vtanh.pop %v439
    %442 = vrot.lane.b32.xlu0 %v440, 64
    %v443 = vpop.permute.xlu0 %442
    %v445 = vmul.f32 %v424, %v443
    %v446 = vpack.c.bf16 %v445, %v445
    %448 = vrot.lane.b32.xlu0 %v446, 32
    %v449 = vpop.permute.xlu0 %448
    %451 = vst.msk [vmem:[#allocation2 + $0x4] sm:$0xc] %vm312, %v449
    %v452 = vunpack.c.l.b16 %v446
    %v453 = vpack.c.b16 %v452, %v452
    %v454 = vrot.slane %v453, 2
    %455 = vrot.lane.b32.xlu0 %v454, 32
    %v456 = vpop.permute.xlu0 %455
    %v458 = vsel %vm144, %v456, 0
    %460 = vmatpush.bf16.msra.mxu0 0
    %461 = vmatpush.bf16.msra.mxu0 0
    %462 = vmatpush.bf16.msra.mxu0 0
    %463 = vmatpush.bf16.msra.mxu0 0
    %464 = vmatpush.bf16.msra.mxu0 0
    %465 = vmatpush.bf16.msra.mxu0 0
    %466 = vmatpush.bf16.msra.mxu0 %v179
    %467 = vmatpush.bf16.msra.mxu0 %v178
    %468 = vmatmul.bf16.gmra.mxu0 %v458
    %v469 = vpop.f32.mrf.mxu0
    %v470 = vadd.f32 0.0, %v469
    %v471 = vpop.f32.mrf.mxu0
    %472 = vdwg.mxu0
    %v473 = vadd.f32 %v166, %v470
    %v474 = vxor.u32 %v473, 2147483648
    %v475 = vmul.f32 %v474, 1.442695
    %v476 = vpow.pop %v475
    %v477 = vadd.f32 %v476, 1.0
    %v478 = vrcp.pop %v477
    %v479 = vmul.f32 %v477, %v478
    %v480 = vsub.f32 1.0, %v479
    %v481 = vmul.f32 %v478, %v480
    %v482 = vadd.f32 %v478, %v481
    %vm483 = vweird.f32 %v477
    %vm484 = vweird.f32 %v478
    %vm485 = vmor %vm483, %vm484
    %v486 = vsel %vm485, %v478, %v482
    %v487 = vand.u32 2147483647, %v477
    %vm488 = vcmp.eq.f32.partialorder %v487, 8.507059e+37
    %v489 = vand.u32 %v477, 2147483648
    %v490 = vor.u32 1.1754944e-38, %v489
    %v491 = vsel %vm488, %v490, %v486
    %v492 = vmul.f32 1.0, %v491
    %v493 = vtanh.pop %v473
    %v495 = vrot.slane %v439, 4
    %v497 = vmul.f32 %v492, %v495
    %499 = vrot.lane.b32.xlu0 %v493, 64
    %v500 = vpop.permute.xlu0 %499
    %v502 = vmul.f32 %v492, %v500
    %504 = vrot.lane.b32.xlu0 %v502, 32
    %v505 = vpop.permute.xlu0 %504
    %v507 = vadd.f32 %v497, %v505
    %v508 = vtanh.pop %v507
    %510 = vrot.lane.b32.xlu0 %v508, 64
    %v511 = vpop.permute.xlu0 %510
    %v513 = vmul.f32 %v492, %v511
    %v514 = vpack.c.bf16 %v513, %v513
    %516 = vrot.lane.b32.xlu0 %v514, 32
    %v517 = vpop.permute.xlu0 %516
    %519 = vst.msk [vmem:[#allocation2 + $0x8] sm:$0x3] %vm241, %v517
    %v520 = vunpack.c.l.b16 %v514
    %v521 = vpack.c.b16 %v520, %v520
    %522 = vrot.lane.b32.xlu0 %v521, 32
    %v523 = vpop.permute.xlu0 %522
    %v525 = vsel %vm144, %v523, 0
    %527 = vmatpush.bf16.msra.mxu0 0
    %528 = vmatpush.bf16.msra.mxu0 0
    %529 = vmatpush.bf16.msra.mxu0 0
    %530 = vmatpush.bf16.msra.mxu0 0
    %531 = vmatpush.bf16.msra.mxu0 0
    %532 = vmatpush.bf16.msra.mxu0 0
    %533 = vmatpush.bf16.msra.mxu0 %v179
    %534 = vmatpush.bf16.msra.mxu0 %v178
    %535 = vmatmul.bf16.gmra.mxu0 %v525
    %v536 = vpop.f32.mrf.mxu0
    %v537 = vadd.f32 0.0, %v536
    %v538 = vpop.f32.mrf.mxu0
    %539 = vdwg.mxu0
    %v541 = vrot.slane %v537, 4
    %v543 = vadd.f32 %v166, %v541
    %v544 = vxor.u32 %v543, 2147483648
    %v545 = vmul.f32 %v544, 1.442695
    %v546 = vpow.pop %v545
    %v547 = vadd.f32 %v546, 1.0
    %v548 = vrcp.pop %v547
    %v549 = vmul.f32 %v547, %v548
    %v550 = vsub.f32 1.0, %v549
    %v551 = vmul.f32 %v548, %v550
    %v552 = vadd.f32 %v548, %v551
    %vm553 = vweird.f32 %v547
    %vm554 = vweird.f32 %v548
    %vm555 = vmor %vm553, %vm554
    %v556 = vsel %vm555, %v548, %v552
    %v557 = vand.u32 2147483647, %v547
    %vm558 = vcmp.eq.f32.partialorder %v557, 8.507059e+37
    %v559 = vand.u32 %v547, 2147483648
    %v560 = vor.u32 1.1754944e-38, %v559
    %v561 = vsel %vm558, %v560, %v556
    %v562 = vmul.f32 1.0, %v561
    %v563 = vtanh.pop %v543
    %v565 = vrot.slane %v507, 4
    %v567 = vmul.f32 %v562, %v565
    %569 = vrot.lane.b32.xlu0 %v563, 64
    %v570 = vpop.permute.xlu0 %569
    %v572 = vmul.f32 %v562, %v570
    %574 = vrot.lane.b32.xlu0 %v572, 32
    %v575 = vpop.permute.xlu0 %574
    %v577 = vadd.f32 %v567, %v575
    %v578 = vtanh.pop %v577
    %580 = vrot.lane.b32.xlu0 %v578, 64
    %v581 = vpop.permute.xlu0 %580
    %v583 = vmul.f32 %v562, %v581
    %v584 = vpack.c.bf16 %v583, %v583
    %586 = vrot.lane.b32.xlu0 %v584, 32
    %v587 = vpop.permute.xlu0 %586
    %589 = vst.msk [vmem:[#allocation2 + $0x8] sm:$0xc] %vm312, %v587
    %v590 = vunpack.c.l.b16 %v584
    %v591 = vpack.c.b16 %v590, %v590
    %v592 = vrot.slane %v591, 2
    %593 = vrot.lane.b32.xlu0 %v592, 32
    %v594 = vpop.permute.xlu0 %593
    %v596 = vsel %vm144, %v594, 0
    %598 = vmatpush.bf16.msra.mxu0 0
    %599 = vmatpush.bf16.msra.mxu0 0
    %600 = vmatpush.bf16.msra.mxu0 0
    %601 = vmatpush.bf16.msra.mxu0 0
    %602 = vmatpush.bf16.msra.mxu0 0
    %603 = vmatpush.bf16.msra.mxu0 0
    %604 = vmatpush.bf16.msra.mxu0 %v179
    %605 = vmatpush.bf16.msra.mxu0 %v178
    %606 = vmatmul.bf16.gmra.mxu0 %v596
    %v607 = vpop.f32.mrf.mxu0
    %v608 = vadd.f32 0.0, %v607
    %v609 = vpop.f32.mrf.mxu0
    %610 = vdwg.mxu0
    %v611 = vadd.f32 %v168, %v608
    %v612 = vxor.u32 %v611, 2147483648
    %v613 = vmul.f32 %v612, 1.442695
    %v614 = vpow.pop %v613
    %v615 = vadd.f32 %v614, 1.0
    %v616 = vrcp.pop %v615
    %v617 = vmul.f32 %v615, %v616
    %v618 = vsub.f32 1.0, %v617
    %v619 = vmul.f32 %v616, %v618
    %v620 = vadd.f32 %v616, %v619
    %vm621 = vweird.f32 %v615
    %vm622 = vweird.f32 %v616
    %vm623 = vmor %vm621, %vm622
    %v624 = vsel %vm623, %v616, %v620
    %v625 = vand.u32 2147483647, %v615
    %vm626 = vcmp.eq.f32.partialorder %v625, 8.507059e+37
    %v627 = vand.u32 %v615, 2147483648
    %v628 = vor.u32 1.1754944e-38, %v627
    %v629 = vsel %vm626, %v628, %v624
    %v630 = vmul.f32 1.0, %v629
    %v631 = vtanh.pop %v611
    %v633 = vrot.slane %v577, 4
    %v635 = vmul.f32 %v630, %v633
    %637 = vrot.lane.b32.xlu0 %v631, 64
    %v638 = vpop.permute.xlu0 %637
    %v640 = vmul.f32 %v630, %v638
    %642 = vrot.lane.b32.xlu0 %v640, 32
    %v643 = vpop.permute.xlu0 %642
    %v645 = vadd.f32 %v635, %v643
    %v646 = vtanh.pop %v645
    %648 = vrot.lane.b32.xlu0 %v646, 64
    %v649 = vpop.permute.xlu0 %648
    %v651 = vmul.f32 %v630, %v649
    %v652 = vpack.c.bf16 %v651, %v651
    %654 = vrot.lane.b32.xlu0 %v652, 32
    %v655 = vpop.permute.xlu0 %654
    %657 = vst.msk [vmem:[#allocation2 + $0xc] sm:$0x3] %vm241, %v655
    %v658 = vunpack.c.l.b16 %v652
    %v659 = vpack.c.b16 %v658, %v658
    %660 = vrot.lane.b32.xlu0 %v659, 32
    %v661 = vpop.permute.xlu0 %660
    %v663 = vsel %vm144, %v661, 0
    %665 = vmatpush.bf16.msra.mxu0 0
    %666 = vmatpush.bf16.msra.mxu0 0
    %667 = vmatpush.bf16.msra.mxu0 0
    %668 = vmatpush.bf16.msra.mxu0 0
    %669 = vmatpush.bf16.msra.mxu0 0
    %670 = vmatpush.bf16.msra.mxu0 0
    %671 = vmatpush.bf16.msra.mxu0 %v179
    %672 = vmatpush.bf16.msra.mxu0 %v178
    %673 = vmatmul.bf16.gmra.mxu0 %v663
    %v674 = vpop.f32.mrf.mxu0
    %v675 = vadd.f32 0.0, %v674
    %v676 = vpop.f32.mrf.mxu0
    %677 = vdwg.mxu0
    %v679 = vrot.slane %v675, 4
    %v681 = vadd.f32 %v168, %v679
    %v682 = vxor.u32 %v681, 2147483648
    %v683 = vmul.f32 %v682, 1.442695
    %v684 = vpow.pop %v683
    %v685 = vadd.f32 %v684, 1.0
    %v686 = vrcp.pop %v685
    %v687 = vmul.f32 %v685, %v686
    %v688 = vsub.f32 1.0, %v687
    %v689 = vmul.f32 %v686, %v688
    %v690 = vadd.f32 %v686, %v689
    %vm691 = vweird.f32 %v685
    %vm692 = vweird.f32 %v686
    %vm693 = vmor %vm691, %vm692
    %v694 = vsel %vm693, %v686, %v690
    %v695 = vand.u32 2147483647, %v685
    %vm696 = vcmp.eq.f32.partialorder %v695, 8.507059e+37
    %v697 = vand.u32 %v685, 2147483648
    %v698 = vor.u32 1.1754944e-38, %v697
    %v699 = vsel %vm696, %v698, %v694
    %v700 = vmul.f32 1.0, %v699
    %v701 = vtanh.pop %v681
    %v703 = vrot.slane %v645, 4
    %v705 = vmul.f32 %v700, %v703
    %707 = vrot.lane.b32.xlu0 %v701, 64
    %v708 = vpop.permute.xlu0 %707
    %v710 = vmul.f32 %v700, %v708
    %712 = vrot.lane.b32.xlu0 %v710, 32
    %v713 = vpop.permute.xlu0 %712
    %v715 = vadd.f32 %v705, %v713
    %v716 = vtanh.pop %v715
    %718 = vrot.lane.b32.xlu0 %v716, 64
    %v719 = vpop.permute.xlu0 %718
    %v721 = vmul.f32 %v700, %v719
    %v722 = vpack.c.bf16 %v721, %v721
    %724 = vrot.lane.b32.xlu0 %v722, 32
    %v725 = vpop.permute.xlu0 %724
    %727 = vst.msk [vmem:[#allocation2 + $0xc] sm:$0xc] %vm312, %v725
    %729 = vrot.lane.b32.xlu0 %v721, 32
    %v730 = vpop.permute.xlu0 %729
    %vm732 = vcmask 261124
    %733 = vst.msk [vmem:[#allocation3 - $0x4] sm:$0xf0] %vm732, %v730
    %735 = vrot.lane.b32.xlu0 %v715, 96
    %v736 = vpop.permute.xlu0 %735
    %738 = vst.msk [vmem:[#allocation5 - $0x4] sm:$0xf0] %vm732, %v736
    %v739 = vld [vmem:[#allocation2] sm:$0xf]
    %v740 = vld [vmem:[#allocation2 + $0x4] sm:$0xf]
    %v741 = vld [vmem:[#allocation2 + $0x8] sm:$0xf]
    %v742 = vld [vmem:[#allocation2 + $0xc] sm:$0xf]
    %v743 = vld [vmem:[%s3] sm:$0xf]
    %v744 = vld [vmem:[%s3 + $0x4] sm:$0xf]
    %v745 = vld [vmem:[%s3 + $0x8] sm:$0xf]
    %v746 = vld [vmem:[%s3 + $0xc] sm:$0xf]
    %s747 = scalar_lea.vmem %s4, 16
    %v748 = vld [vmem:[%s747] sm:$0xf]
    %v749 = vld [vmem:[%s747 + $0x4] sm:$0xf]
    %v750 = vld [vmem:[%s747 + $0x8] sm:$0xf]
    %v751 = vld [vmem:[%s747 + $0xc] sm:$0xf]
    %s752 = scalar_lea.vmem %s5, 1
    %v753 = vld [vmem:[%s752] sm:$0x1]
    %v755 = vperm.slane %v753, 0
    %v761 = vunpack.c.l.b16 %v739
    %v762 = vunpack.c.l.b16 %v740
    %v763 = vunpack.c.l.b16 %v741
    %v764 = vunpack.c.l.b16 %v742
    %v765 = vpack.c.b16 %v762, %v761
    %v766 = vpack.c.b16 %v764, %v763
    %v771 = vunpack.c.l.b16 %v743
    %v772 = vunpack.c.l.b16 %v744
    %v773 = vunpack.c.l.b16 %v745
    %v774 = vunpack.c.l.b16 %v746
    %v775 = vpack.c.b16 %v772, %v771
    %v776 = vpack.c.b16 %v774, %v773
    %v780 = vsel %vm144, %v765, 0
    %v783 = vsel %vm144, %v766, 0
    %785 = vmatpush.bf16.msra.mxu0 0
    %786 = vmatpush.bf16.msra.mxu0 0
    %787 = vmatpush.bf16.msra.mxu0 0
    %788 = vmatpush.bf16.msra.mxu0 0
    %789 = vmatpush.bf16.msra.mxu0 0
    %790 = vmatpush.bf16.msra.mxu0 0
    %791 = vmatpush.bf16.msra.mxu0 %v776
    %792 = vmatpush.bf16.msra.mxu0 %v775
    %793 = vmatmul.bf16.gmra.mxu0 %v780
    %v794 = vpop.f32.mrf.mxu0
    %v795 = vadd.f32 %v755, %v794
    %v796 = vpop.f32.mrf.mxu0
    %v797 = vadd.f32 %v755, %v796
    %798 = vmatmul.bf16.gmra.mxu0 %v783
    %v799 = vpop.f32.mrf.mxu0
    %v800 = vadd.f32 %v755, %v799
    %v801 = vpop.f32.mrf.mxu0
    %v802 = vadd.f32 %v755, %v801
    %803 = vdwg.mxu0
    %v808 = vunpack.c.l.b16 %v748
    %v809 = vunpack.c.l.b16 %v749
    %v810 = vunpack.c.l.b16 %v750
    %v811 = vunpack.c.l.b16 %v751
    %v812 = vpack.c.b16 %v809, %v808
    %v813 = vpack.c.b16 %v811, %v810
    %816 = vmatpush.bf16.msra.mxu0 0
    %817 = vmatpush.bf16.msra.mxu0 0
    %818 = vmatpush.bf16.msra.mxu0 0
    %819 = vmatpush.bf16.msra.mxu0 0
    %820 = vmatpush.bf16.msra.mxu0 0
    %821 = vmatpush.bf16.msra.mxu0 0
    %822 = vmatpush.bf16.msra.mxu0 %v813
    %823 = vmatpush.bf16.msra.mxu0 %v812
    %824 = vmatmul.bf16.gmra.mxu0 %v183
    %v825 = vpop.f32.mrf.mxu0
    %v826 = vadd.f32 0.0, %v825
    %v827 = vpop.f32.mrf.mxu0
    %828 = vdwg.mxu0
    %v829 = vadd.f32 %v795, %v826
    %v830 = vxor.u32 %v829, 2147483648
    %v831 = vmul.f32 %v830, 1.442695
    %v832 = vpow.pop %v831
    %v833 = vadd.f32 %v832, 1.0
    %v834 = vrcp.pop %v833
    %v835 = vmul.f32 %v833, %v834
    %v836 = vsub.f32 1.0, %v835
    %v837 = vmul.f32 %v834, %v836
    %v838 = vadd.f32 %v834, %v837
    %vm839 = vweird.f32 %v833
    %vm840 = vweird.f32 %v834
    %vm841 = vmor %vm839, %vm840
    %v842 = vsel %vm841, %v834, %v838
    %v843 = vand.u32 2147483647, %v833
    %vm844 = vcmp.eq.f32.partialorder %v843, 8.507059e+37
    %v845 = vand.u32 %v833, 2147483648
    %v846 = vor.u32 1.1754944e-38, %v845
    %v847 = vsel %vm844, %v846, %v842
    %v848 = vmul.f32 1.0, %v847
    %v849 = vtanh.pop %v829
    %v850 = vmul.f32 %v848, 0.0
    %852 = vrot.lane.b32.xlu0 %v849, 64
    %v853 = vpop.permute.xlu0 %852
    %v855 = vmul.f32 %v848, %v853
    %857 = vrot.lane.b32.xlu0 %v855, 32
    %v858 = vpop.permute.xlu0 %857
    %v860 = vadd.f32 %v850, %v858
    %v861 = vtanh.pop %v860
    %863 = vrot.lane.b32.xlu0 %v861, 64
    %v864 = vpop.permute.xlu0 %863
    %v866 = vmul.f32 %v848, %v864
    %v867 = vpack.c.bf16 %v866, %v866
    %869 = vrot.lane.b32.xlu0 %v867, 32
    %v870 = vpop.permute.xlu0 %869
    %v872 = vsel %vm144, %v870, 0
    %874 = vmatpush.bf16.msra.mxu0 0
    %875 = vmatpush.bf16.msra.mxu0 0
    %876 = vmatpush.bf16.msra.mxu0 0
    %877 = vmatpush.bf16.msra.mxu0 0
    %878 = vmatpush.bf16.msra.mxu0 0
    %879 = vmatpush.bf16.msra.mxu0 0
    %880 = vmatpush.bf16.msra.mxu0 %v813
    %881 = vmatpush.bf16.msra.mxu0 %v812
    %882 = vmatmul.bf16.gmra.mxu0 %v872
    %v883 = vpop.f32.mrf.mxu0
    %v884 = vadd.f32 0.0, %v883
    %v885 = vpop.f32.mrf.mxu0
    %886 = vdwg.mxu0
    %v888 = vrot.slane %v884, 4
    %v890 = vadd.f32 %v795, %v888
    %v891 = vxor.u32 %v890, 2147483648
    %v892 = vmul.f32 %v891, 1.442695
    %v893 = vpow.pop %v892
    %v894 = vadd.f32 %v893, 1.0
    %v895 = vrcp.pop %v894
    %v896 = vmul.f32 %v894, %v895
    %v897 = vsub.f32 1.0, %v896
    %v898 = vmul.f32 %v895, %v897
    %v899 = vadd.f32 %v895, %v898
    %vm900 = vweird.f32 %v894
    %vm901 = vweird.f32 %v895
    %vm902 = vmor %vm900, %vm901
    %v903 = vsel %vm902, %v895, %v899
    %v904 = vand.u32 2147483647, %v894
    %vm905 = vcmp.eq.f32.partialorder %v904, 8.507059e+37
    %v906 = vand.u32 %v894, 2147483648
    %v907 = vor.u32 1.1754944e-38, %v906
    %v908 = vsel %vm905, %v907, %v903
    %v909 = vmul.f32 1.0, %v908
    %v910 = vtanh.pop %v890
    %v912 = vrot.slane %v860, 4
    %v914 = vmul.f32 %v909, %v912
    %916 = vrot.lane.b32.xlu0 %v910, 64
    %v917 = vpop.permute.xlu0 %916
    %v919 = vmul.f32 %v909, %v917
    %921 = vrot.lane.b32.xlu0 %v919, 32
    %v922 = vpop.permute.xlu0 %921
    %v924 = vadd.f32 %v914, %v922
    %v925 = vtanh.pop %v924
    %927 = vrot.lane.b32.xlu0 %v925, 64
    %v928 = vpop.permute.xlu0 %927
    %v930 = vmul.f32 %v909, %v928
    %v931 = vpack.c.bf16 %v930, %v930
    %v933 = vrot.slane %v931, 2
    %934 = vrot.lane.b32.xlu0 %v933, 32
    %v935 = vpop.permute.xlu0 %934
    %v937 = vsel %vm144, %v935, 0
    %939 = vmatpush.bf16.msra.mxu0 0
    %940 = vmatpush.bf16.msra.mxu0 0
    %941 = vmatpush.bf16.msra.mxu0 0
    %942 = vmatpush.bf16.msra.mxu0 0
    %943 = vmatpush.bf16.msra.mxu0 0
    %944 = vmatpush.bf16.msra.mxu0 0
    %945 = vmatpush.bf16.msra.mxu0 %v813
    %946 = vmatpush.bf16.msra.mxu0 %v812
    %947 = vmatmul.bf16.gmra.mxu0 %v937
    %v948 = vpop.f32.mrf.mxu0
    %v949 = vadd.f32 0.0, %v948
    %v950 = vpop.f32.mrf.mxu0
    %951 = vdwg.mxu0
    %v952 = vadd.f32 %v797, %v949
    %v953 = vxor.u32 %v952, 2147483648
    %v954 = vmul.f32 %v953, 1.442695
    %v955 = vpow.pop %v954
    %v956 = vadd.f32 %v955, 1.0
    %v957 = vrcp.pop %v956
    %v958 = vmul.f32 %v956, %v957
    %v959 = vsub.f32 1.0, %v958
    %v960 = vmul.f32 %v957, %v959
    %v961 = vadd.f32 %v957, %v960
    %vm962 = vweird.f32 %v956
    %vm963 = vweird.f32 %v957
    %vm964 = vmor %vm962, %vm963
    %v965 = vsel %vm964, %v957, %v961
    %v966 = vand.u32 2147483647, %v956
    %vm967 = vcmp.eq.f32.partialorder %v966, 8.507059e+37
    %v968 = vand.u32 %v956, 2147483648
    %v969 = vor.u32 1.1754944e-38, %v968
    %v970 = vsel %vm967, %v969, %v965
    %v971 = vmul.f32 1.0, %v970
    %v972 = vtanh.pop %v952
    %v974 = vrot.slane %v924, 4
    %v976 = vmul.f32 %v971, %v974
    %978 = vrot.lane.b32.xlu0 %v972, 64
    %v979 = vpop.permute.xlu0 %978
    %v981 = vmul.f32 %v971, %v979
    %983 = vrot.lane.b32.xlu0 %v981, 32
    %v984 = vpop.permute.xlu0 %983
    %v986 = vadd.f32 %v976, %v984
    %v987 = vtanh.pop %v986
    %989 = vrot.lane.b32.xlu0 %v987, 64
    %v990 = vpop.permute.xlu0 %989
    %v992 = vmul.f32 %v971, %v990
    %v993 = vpack.c.bf16 %v992, %v992
    %995 = vrot.lane.b32.xlu0 %v993, 32
    %v996 = vpop.permute.xlu0 %995
    %v998 = vsel %vm144, %v996, 0
    %1000 = vmatpush.bf16.msra.mxu0 0
    %1001 = vmatpush.bf16.msra.mxu0 0
    %1002 = vmatpush.bf16.msra.mxu0 0
    %1003 = vmatpush.bf16.msra.mxu0 0
    %1004 = vmatpush.bf16.msra.mxu0 0
    %1005 = vmatpush.bf16.msra.mxu0 0
    %1006 = vmatpush.bf16.msra.mxu0 %v813
    %1007 = vmatpush.bf16.msra.mxu0 %v812
    %1008 = vmatmul.bf16.gmra.mxu0 %v998
    %v1009 = vpop.f32.mrf.mxu0
    %v1010 = vadd.f32 0.0, %v1009
    %v1011 = vpop.f32.mrf.mxu0
    %1012 = vdwg.mxu0
    %v1014 = vrot.slane %v1010, 4
    %v1016 = vadd.f32 %v797, %v1014
    %v1017 = vxor.u32 %v1016, 2147483648
    %v1018 = vmul.f32 %v1017, 1.442695
    %v1019 = vpow.pop %v1018
    %v1020 = vadd.f32 %v1019, 1.0
    %v1021 = vrcp.pop %v1020
    %v1022 = vmul.f32 %v1020, %v1021
    %v1023 = vsub.f32 1.0, %v1022
    %v1024 = vmul.f32 %v1021, %v1023
    %v1025 = vadd.f32 %v1021, %v1024
    %vm1026 = vweird.f32 %v1020
    %vm1027 = vweird.f32 %v1021
    %vm1028 = vmor %vm1026, %vm1027
    %v1029 = vsel %vm1028, %v1021, %v1025
    %v1030 = vand.u32 2147483647, %v1020
    %vm1031 = vcmp.eq.f32.partialorder %v1030, 8.507059e+37
    %v1032 = vand.u32 %v1020, 2147483648
    %v1033 = vor.u32 1.1754944e-38, %v1032
    %v1034 = vsel %vm1031, %v1033, %v1029
    %v1035 = vmul.f32 1.0, %v1034
    %v1036 = vtanh.pop %v1016
    %v1038 = vrot.slane %v986, 4
    %v1040 = vmul.f32 %v1035, %v1038
    %1042 = vrot.lane.b32.xlu0 %v1036, 64
    %v1043 = vpop.permute.xlu0 %1042
    %v1045 = vmul.f32 %v1035, %v1043
    %1047 = vrot.lane.b32.xlu0 %v1045, 32
    %v1048 = vpop.permute.xlu0 %1047
    %v1050 = vadd.f32 %v1040, %v1048
    %v1051 = vtanh.pop %v1050
    %1053 = vrot.lane.b32.xlu0 %v1051, 64
    %v1054 = vpop.permute.xlu0 %1053
    %v1056 = vmul.f32 %v1035, %v1054
    %v1057 = vpack.c.bf16 %v1056, %v1056
    %v1059 = vrot.slane %v1057, 2
    %1060 = vrot.lane.b32.xlu0 %v1059, 32
    %v1061 = vpop.permute.xlu0 %1060
    %v1063 = vsel %vm144, %v1061, 0
    %1065 = vmatpush.bf16.msra.mxu0 0
    %1066 = vmatpush.bf16.msra.mxu0 0
    %1067 = vmatpush.bf16.msra.mxu0 0
    %1068 = vmatpush.bf16.msra.mxu0 0
    %1069 = vmatpush.bf16.msra.mxu0 0
    %1070 = vmatpush.bf16.msra.mxu0 0
    %1071 = vmatpush.bf16.msra.mxu0 %v813
    %1072 = vmatpush.bf16.msra.mxu0 %v812
    %1073 = vmatmul.bf16.gmra.mxu0 %v1063
    %v1074 = vpop.f32.mrf.mxu0
    %v1075 = vadd.f32 0.0, %v1074
    %v1076 = vpop.f32.mrf.mxu0
    %1077 = vdwg.mxu0
    %v1078 = vadd.f32 %v800, %v1075
    %v1079 = vxor.u32 %v1078, 2147483648
    %v1080 = vmul.f32 %v1079, 1.442695
    %v1081 = vpow.pop %v1080
    %v1082 = vadd.f32 %v1081, 1.0
    %v1083 = vrcp.pop %v1082
    %v1084 = vmul.f32 %v1082, %v1083
    %v1085 = vsub.f32 1.0, %v1084
    %v1086 = vmul.f32 %v1083, %v1085
    %v1087 = vadd.f32 %v1083, %v1086
    %vm1088 = vweird.f32 %v1082
    %vm1089 = vweird.f32 %v1083
    %vm1090 = vmor %vm1088, %vm1089
    %v1091 = vsel %vm1090, %v1083, %v1087
    %v1092 = vand.u32 2147483647, %v1082
    %vm1093 = vcmp.eq.f32.partialorder %v1092, 8.507059e+37
    %v1094 = vand.u32 %v1082, 2147483648
    %v1095 = vor.u32 1.1754944e-38, %v1094
    %v1096 = vsel %vm1093, %v1095, %v1091
    %v1097 = vmul.f32 1.0, %v1096
    %v1098 = vtanh.pop %v1078
    %v1100 = vrot.slane %v1050, 4
    %v1102 = vmul.f32 %v1097, %v1100
    %1104 = vrot.lane.b32.xlu0 %v1098, 64
    %v1105 = vpop.permute.xlu0 %1104
    %v1107 = vmul.f32 %v1097, %v1105
    %1109 = vrot.lane.b32.xlu0 %v1107, 32
    %v1110 = vpop.permute.xlu0 %1109
    %v1112 = vadd.f32 %v1102, %v1110
    %v1113 = vtanh.pop %v1112
    %1115 = vrot.lane.b32.xlu0 %v1113, 64
    %v1116 = vpop.permute.xlu0 %1115
    %v1118 = vmul.f32 %v1097, %v1116
    %v1119 = vpack.c.bf16 %v1118, %v1118
    %1121 = vrot.lane.b32.xlu0 %v1119, 32
    %v1122 = vpop.permute.xlu0 %1121
    %v1124 = vsel %vm144, %v1122, 0
    %1126 = vmatpush.bf16.msra.mxu0 0
    %1127 = vmatpush.bf16.msra.mxu0 0
    %1128 = vmatpush.bf16.msra.mxu0 0
    %1129 = vmatpush.bf16.msra.mxu0 0
    %1130 = vmatpush.bf16.msra.mxu0 0
    %1131 = vmatpush.bf16.msra.mxu0 0
    %1132 = vmatpush.bf16.msra.mxu0 %v813
    %1133 = vmatpush.bf16.msra.mxu0 %v812
    %1134 = vmatmul.bf16.gmra.mxu0 %v1124
    %v1135 = vpop.f32.mrf.mxu0
    %v1136 = vadd.f32 0.0, %v1135
    %v1137 = vpop.f32.mrf.mxu0
    %1138 = vdwg.mxu0
    %v1140 = vrot.slane %v1136, 4
    %v1142 = vadd.f32 %v800, %v1140
    %v1143 = vxor.u32 %v1142, 2147483648
    %v1144 = vmul.f32 %v1143, 1.442695
    %v1145 = vpow.pop %v1144
    %v1146 = vadd.f32 %v1145, 1.0
    %v1147 = vrcp.pop %v1146
    %v1148 = vmul.f32 %v1146, %v1147
    %v1149 = vsub.f32 1.0, %v1148
    %v1150 = vmul.f32 %v1147, %v1149
    %v1151 = vadd.f32 %v1147, %v1150
    %vm1152 = vweird.f32 %v1146
    %vm1153 = vweird.f32 %v1147
    %vm1154 = vmor %vm1152, %vm1153
    %v1155 = vsel %vm1154, %v1147, %v1151
    %v1156 = vand.u32 2147483647, %v1146
    %vm1157 = vcmp.eq.f32.partialorder %v1156, 8.507059e+37
    %v1158 = vand.u32 %v1146, 2147483648
    %v1159 = vor.u32 1.1754944e-38, %v1158
    %v1160 = vsel %vm1157, %v1159, %v1155
    %v1161 = vmul.f32 1.0, %v1160
    %v1162 = vtanh.pop %v1142
    %v1164 = vrot.slane %v1112, 4
    %v1166 = vmul.f32 %v1161, %v1164
    %1168 = vrot.lane.b32.xlu0 %v1162, 64
    %v1169 = vpop.permute.xlu0 %1168
    %v1171 = vmul.f32 %v1161, %v1169
    %1173 = vrot.lane.b32.xlu0 %v1171, 32
    %v1174 = vpop.permute.xlu0 %1173
    %v1176 = vadd.f32 %v1166, %v1174
    %v1177 = vtanh.pop %v1176
    %1179 = vrot.lane.b32.xlu0 %v1177, 64
    %v1180 = vpop.permute.xlu0 %1179
    %v1182 = vmul.f32 %v1161, %v1180
    %v1183 = vpack.c.bf16 %v1182, %v1182
    %v1185 = vrot.slane %v1183, 2
    %1186 = vrot.lane.b32.xlu0 %v1185, 32
    %v1187 = vpop.permute.xlu0 %1186
    %v1189 = vsel %vm144, %v1187, 0
    %1191 = vmatpush.bf16.msra.mxu0 0
    %1192 = vmatpush.bf16.msra.mxu0 0
    %1193 = vmatpush.bf16.msra.mxu0 0
    %1194 = vmatpush.bf16.msra.mxu0 0
    %1195 = vmatpush.bf16.msra.mxu0 0
    %1196 = vmatpush.bf16.msra.mxu0 0
    %1197 = vmatpush.bf16.msra.mxu0 %v813
    %1198 = vmatpush.bf16.msra.mxu0 %v812
    %1199 = vmatmul.bf16.gmra.mxu0 %v1189
    %v1200 = vpop.f32.mrf.mxu0
    %v1201 = vadd.f32 0.0, %v1200
    %v1202 = vpop.f32.mrf.mxu0
    %1203 = vdwg.mxu0
    %v1204 = vadd.f32 %v802, %v1201
    %v1205 = vxor.u32 %v1204, 2147483648
    %v1206 = vmul.f32 %v1205, 1.442695
    %v1207 = vpow.pop %v1206
    %v1208 = vadd.f32 %v1207, 1.0
    %v1209 = vrcp.pop %v1208
    %v1210 = vmul.f32 %v1208, %v1209
    %v1211 = vsub.f32 1.0, %v1210
    %v1212 = vmul.f32 %v1209, %v1211
    %v1213 = vadd.f32 %v1209, %v1212
    %vm1214 = vweird.f32 %v1208
    %vm1215 = vweird.f32 %v1209
    %vm1216 = vmor %vm1214, %vm1215
    %v1217 = vsel %vm1216, %v1209, %v1213
    %v1218 = vand.u32 2147483647, %v1208
    %vm1219 = vcmp.eq.f32.partialorder %v1218, 8.507059e+37
    %v1220 = vand.u32 %v1208, 2147483648
    %v1221 = vor.u32 1.1754944e-38, %v1220
    %v1222 = vsel %vm1219, %v1221, %v1217
    %v1223 = vmul.f32 1.0, %v1222
    %v1224 = vtanh.pop %v1204
    %v1226 = vrot.slane %v1176, 4
    %v1228 = vmul.f32 %v1223, %v1226
    %1230 = vrot.lane.b32.xlu0 %v1224, 64
    %v1231 = vpop.permute.xlu0 %1230
    %v1233 = vmul.f32 %v1223, %v1231
    %1235 = vrot.lane.b32.xlu0 %v1233, 32
    %v1236 = vpop.permute.xlu0 %1235
    %v1238 = vadd.f32 %v1228, %v1236
    %v1239 = vtanh.pop %v1238
    %1241 = vrot.lane.b32.xlu0 %v1239, 64
    %v1242 = vpop.permute.xlu0 %1241
    %v1244 = vmul.f32 %v1223, %v1242
    %v1245 = vpack.c.bf16 %v1244, %v1244
    %1247 = vrot.lane.b32.xlu0 %v1245, 32
    %v1248 = vpop.permute.xlu0 %1247
    %v1250 = vsel %vm144, %v1248, 0
    %1252 = vmatpush.bf16.msra.mxu0 0
    %1253 = vmatpush.bf16.msra.mxu0 0
    %1254 = vmatpush.bf16.msra.mxu0 0
    %1255 = vmatpush.bf16.msra.mxu0 0
    %1256 = vmatpush.bf16.msra.mxu0 0
    %1257 = vmatpush.bf16.msra.mxu0 0
    %1258 = vmatpush.bf16.msra.mxu0 %v813
    %1259 = vmatpush.bf16.msra.mxu0 %v812
    %1260 = vmatmul.bf16.gmra.mxu0 %v1250
    %v1261 = vpop.f32.mrf.mxu0
    %v1262 = vadd.f32 0.0, %v1261
    %v1263 = vpop.f32.mrf.mxu0
    %1264 = vdwg.mxu0
    %v1266 = vrot.slane %v1262, 4
    %v1268 = vadd.f32 %v802, %v1266
    %v1269 = vxor.u32 %v1268, 2147483648
    %v1270 = vmul.f32 %v1269, 1.442695
    %v1271 = vpow.pop %v1270
    %v1272 = vadd.f32 %v1271, 1.0
    %v1273 = vrcp.pop %v1272
    %v1274 = vmul.f32 %v1272, %v1273
    %v1275 = vsub.f32 1.0, %v1274
    %v1276 = vmul.f32 %v1273, %v1275
    %v1277 = vadd.f32 %v1273, %v1276
    %vm1278 = vweird.f32 %v1272
    %vm1279 = vweird.f32 %v1273
    %vm1280 = vmor %vm1278, %vm1279
    %v1281 = vsel %vm1280, %v1273, %v1277
    %v1282 = vand.u32 2147483647, %v1272
    %vm1283 = vcmp.eq.f32.partialorder %v1282, 8.507059e+37
    %v1284 = vand.u32 %v1272, 2147483648
    %v1285 = vor.u32 1.1754944e-38, %v1284
    %v1286 = vsel %vm1283, %v1285, %v1281
    %v1287 = vmul.f32 1.0, %v1286
    %v1288 = vtanh.pop %v1268
    %v1290 = vrot.slane %v1238, 4
    %v1292 = vmul.f32 %v1287, %v1290
    %1294 = vrot.lane.b32.xlu0 %v1288, 64
    %v1295 = vpop.permute.xlu0 %1294
    %v1297 = vmul.f32 %v1287, %v1295
    %1299 = vrot.lane.b32.xlu0 %v1297, 32
    %v1300 = vpop.permute.xlu0 %1299
    %v1302 = vadd.f32 %v1292, %v1300
    %v1303 = vtanh.pop %v1302
    %1305 = vrot.lane.b32.xlu0 %v1303, 64
    %v1306 = vpop.permute.xlu0 %1305
    %v1308 = vmul.f32 %v1287, %v1306
    %1310 = vrot.lane.b32.xlu0 %v1308, 32
    %v1311 = vpop.permute.xlu0 %1310
    %s1313 = scalar_lea.vmem [#allocation3], 4
    %1314 = vst.msk [vmem:[%s1313 - $0x4] sm:$0xf0] %vm732, %v1311
    %1316 = vrot.lane.b32.xlu0 %v1302, 96
    %v1317 = vpop.permute.xlu0 %1316
    %s1319 = scalar_lea.vmem [#allocation5], 4
    %1320 = vst.msk [vmem:[%s1319 - $0x4] sm:$0xf0] %vm732, %v1317
    // Predicated region
    $region26: #{tpu_custom_call.1} parent=1 // pred_check
      _
    $region27: #{tpu_custom_call.1} parent=1 // pred_check_branch
      %1322 = sbr.rel (0) target = $region29
    $region28: #{tpu_custom_call.1} parent=1 // pred_region
      %1324 = vsyncadd [#allocation4], 0
      %s1325 = sshll.u32 [#allocation3], 4
      %s1326 = int_to_ptr.vmem [resolvable:$true] %s1325
      %s1327 = sshll.u32 %s6, 4
      %s1328 = int_to_ptr.hbm [resolvable:$true] %s1327
      %1333 = dma.vmem_to_hbm [thread:$0]  %s1326, 128, %s1328, [#allocation4], 64, 64, 4
    $region29: #{tpu_custom_call.1} parent=1 // pred_fallthru
      _
    // Predicated region
    $region30: #{tpu_custom_call.1} parent=1 // pred_check
      _
    $region31: #{tpu_custom_call.1} parent=1 // pred_check_branch
      %1335 = sbr.rel (0) target = $region33
    $region32: #{tpu_custom_call.1} parent=1 // pred_region
      %1337 = vsyncadd [#allocation6], 0
      %s1338 = sshll.u32 [#allocation5], 4
      %s1339 = int_to_ptr.vmem [resolvable:$true] %s1338
      %s1340 = sshll.u32 %s7, 4
      %s1341 = int_to_ptr.hbm [resolvable:$true] %s1340
      %1346 = dma.vmem_to_hbm [thread:$0]  %s1339, 128, %s1341, [#allocation6], 64, 64, 4
    $region33: #{tpu_custom_call.1} parent=1 // pred_fallthru
      _
    // Predicated region
    $region34: #{tpu_custom_call.1} parent=1 // pred_check
      _
    $region35: #{tpu_custom_call.1} parent=1 // pred_check_branch
      %1348 = sbr.rel (0) target = $region37
    $region36: #{tpu_custom_call.1} parent=1 // pred_region
      %1350 = dma.done [#allocation4], 128
    $region37: #{tpu_custom_call.1} parent=1 // pred_fallthru
      _
    // Predicated region
    $region38: #{tpu_custom_call.1} parent=1 // pred_check
      _
    $region39: #{tpu_custom_call.1} parent=1 // pred_check_branch
      %1352 = sbr.rel (0) target = $region41
    $region40: #{tpu_custom_call.1} parent=1 // pred_region
      %1354 = dma.done [#allocation6], 128
    $region41: #{tpu_custom_call.1} parent=1 // pred_fallthru
      _
    %1355 = vsyncpa [#allocation4], 1
    %1356 = vsyncpa [#allocation6], 1

</llo_original>
